<compile_context>
chip_gen: v7x
topology: tpu7x:2x2x1
jax: 0.10.0
libtpu: 0.0.40
codegen_flags: <defaults>
</compile_context>

<pallas_src>
import functools

import jax
import jax.numpy as jnp
from jax.experimental import pallas as pl
from jax.experimental.pallas import tpu as pltpu

# ----------------------------- hyper-parameters -----------------------------
NUM_IMAGES = 2
IN_CHANNELS = 16          # backbone out_channels (small synthetic)
FEAT_H = 16
FEAT_W = 16
RESOLUTION = 4            # pooler resolution
NUM_BINS = RESOLUTION * RESOLUTION
SPATIAL_SCALE = 0.25      # feature stride 4 (image 64x64 -> feature 16x16)
HIDDEN = 128              # MLP representation size / pooling_dim (== LANE)
NUM_OBJ_CLS = 32          # cfg.MODEL.ROI_BOX_HEAD.NUM_CLASSES
NUM_REL_CLS = 16          # cfg.MODEL.ROI_RELATION_HEAD.NUM_CLASSES
POOL_DIM = IN_CHANNELS * NUM_BINS  # 256
LANE = 128                # lane-dense classifier width (padded)
SUB = 8                   # sublane row alignment
NEG_INF = -1e9            # bias for padded class columns (exp -> 0)


def _round_up(n, m):
    return ((n + m - 1) // m) * m


# ------------------------------ the fused kernel ------------------------------
# Per-image refs (leading block dim of 1):
#   feat_ref    (1, H*W, C)            bf16  NHWC-flattened feature map
#   interp_ref  (1, NUM_BINS*NROI, HW) bf16  bilinear interp matrix (boxes+unions)
#   pair_oh_ref (1, NPP, 2*NBP)        bf16  [sub one-hot | obj one-hot]
# Resident weights:
#   w1_ref      (NUM_BINS*C, 2*H)  [box fc6 | union fc6]   bf16
#   w2_ref      (H, 2*H)           [box fc7 | union fc7]   bf16
#   post_w_ref  (H, 2*H)           [W_sub   | W_obj]       bf16
#   cls_w_ref   (H, 2*LANE)        [obj_w   | rel_w]       bf16 (cols 0-padded)
#   bias_ref    (8, 2*LANE)        f32 stacked bias slab
def relation_head_kernel(feat_ref, interp_ref, pair_oh_ref,
                         w1_ref, w2_ref, post_w_ref, cls_w_ref, bias_ref,
                         roi_out_ref, obj_out_ref, rel_out_ref):
    nbp = roi_out_ref.shape[1]            # padded #boxes per image
    npp = rel_out_ref.shape[1]            # padded #pairs per image
    nroi = nbp + npp

    feat = feat_ref[0]                    # (HW, C) bf16 — used by ONE matmul only
    interp = interp_ref[0]                # (NUM_BINS*nroi, HW) bf16

    # 1) ROI-Align for ALL bins of box + union rois: one bf16 MXU matmul.
    pooled = jnp.dot(interp, feat, preferred_element_type=jnp.float32)
    pooled = pooled.reshape(NUM_BINS, nroi, IN_CHANNELS).astype(jnp.bfloat16)

    # 2) fc6 for both heads side-by-side (256-wide) as a bin-batched dot.
    w1 = w1_ref[...].reshape(NUM_BINS, IN_CHANNELS, 2 * HIDDEN)
    h6 = jnp.einsum('bnc,bch->bnh', pooled, w1,
                    preferred_element_type=jnp.float32)
    h6 = jnp.sum(h6, axis=0) + bias_ref[0:1, :]
    h6 = jnp.maximum(h6, 0.0)                                   # (nroi, 256)

    # 3) fc7: box rows take the left half, union rows the right half; stack
    #    them and multiply the laterally-concatenated [box_w2 | uni_w2] once.
    h7_in = jnp.concatenate([h6[:nbp, :HIDDEN], h6[nbp:, HIDDEN:]], axis=0)
    h7 = jnp.dot(h7_in.astype(jnp.bfloat16), w2_ref[...],
                 preferred_element_type=jnp.float32) + bias_ref[1:2, :]
    h7 = jnp.maximum(h7, 0.0)                                   # (nroi, 256)
    roi_feats = h7[:nbp, :HIDDEN]                               # (nbp, 128) f32
    union_feats = h7[nbp:, HIDDEN:]                             # (npp, 128) f32
    roi_out_ref[0] = roi_feats

    # 4) predictor tail: pre-contract per-box against [W_sub | W_obj], then one
    #    fused one-hot gather matmul for all pairs (sub & obj share the K dim).
    contrib = jnp.dot(roi_feats.astype(jnp.bfloat16), post_w_ref[...],
                      preferred_element_type=jnp.float32)        # (nbp, 256)
    contrib_stack = jnp.concatenate(
        [contrib[:, :HIDDEN], contrib[:, HIDDEN:]], axis=0).astype(jnp.bfloat16)
    prod = jnp.dot(pair_oh_ref[0], contrib_stack,
                   preferred_element_type=jnp.float32) + bias_ref[3:4, :HIDDEN]
    prod = jnp.maximum(prod, 0.0) * union_feats                  # (npp, 128)

    # 5) object classifier + rel_compress fused into one 256-wide matmul.
    cls_in = jnp.concatenate([roi_feats, prod], axis=0).astype(jnp.bfloat16)
    logits = jnp.dot(cls_in, cls_w_ref[...],
                     preferred_element_type=jnp.float32) + bias_ref[2:3, :]

    def softmax(x):                       # exact normalization (review concern)
        m = jnp.max(x, axis=-1, keepdims=True)
        e = jnp.exp(x - m)
        return e / jnp.sum(e, axis=-1, keepdims=True)

    obj_out_ref[0] = softmax(logits[:nbp, :LANE])
    rel_out_ref[0] = softmax(logits[nbp:, LANE:])


# ---------------------------- pallas_call wrapper ----------------------------
def relation_head_pallas(kp, feat, interp, pair_oh, nbp, npp):
    ni, hw, c = feat.shape

    def img_map(i):
        return (i, 0, 0)

    def w_map(i):
        return (0, 0)

    in_specs = [
        pl.BlockSpec((1, hw, c), img_map),
        pl.BlockSpec((1, interp.shape[1], hw), img_map),
        pl.BlockSpec((1, npp, 2 * nbp), img_map),
        pl.BlockSpec(kp["w1_cat"].shape, w_map),
        pl.BlockSpec(kp["w2_cat"].shape, w_map),
        pl.BlockSpec(kp["post_w_cat"].shape, w_map),
        pl.BlockSpec(kp["cls_w_cat"].shape, w_map),
        pl.BlockSpec(kp["biases"].shape, w_map),
    ]
    out_shape = (jax.ShapeDtypeStruct((ni, nbp, HIDDEN), jnp.float32),
                 jax.ShapeDtypeStruct((ni, nbp, LANE), jnp.float32),
                 jax.ShapeDtypeStruct((ni, npp, LANE), jnp.float32))
    out_specs = (pl.BlockSpec((1, nbp, HIDDEN), img_map),
                 pl.BlockSpec((1, nbp, LANE), img_map),
                 pl.BlockSpec((1, npp, LANE), img_map))
    # TODO(synk): at real FPN feature-map sizes, tile HW via an extra grid axis
    # (or keep feat in HBM + DMA-gather) and set vmem_limit_bytes explicitly.
    return pl.pallas_call(
        relation_head_kernel,
        out_shape=out_shape,
        grid_spec=pltpu.PrefetchScalarGridSpec(
            num_scalar_prefetch=0,
            grid=(ni,),                          # one step per image
            in_specs=in_specs,
            out_specs=out_specs),
        compiler_params=pltpu.CompilerParams(
            dimension_semantics=("parallel",)),  # megacore shard on v7x
    )(feat, interp, pair_oh, kp["w1_cat"], kp["w2_cat"],
      kp["post_w_cat"], kp["cls_w_cat"], kp["biases"])


# ----------------- wrapper-side bilinear interpolation matrix -----------------
def build_interp(rois, fh, fw):
    """rois: (NI, NROI, 4) boxes (x1,y1,x2,y2) in image coords.
    Returns (NI, NUM_BINS*NROI, fh*fw) f32 interpolation matrices, rows
    bin-major (row = bin*NROI + roi).  sampling_ratio=1 (bin centers),
    aligned=False, taps clamped to the border."""
    ni, nroi, _ = rois.shape
    b = rois * SPATIAL_SCALE
    bx1, by1, bx2, by2 = b[..., 0], b[..., 1], b[..., 2], b[..., 3]
    bin_w = jnp.maximum(bx2 - bx1, 1.0) / RESOLUTION
    bin_h = jnp.maximum(by2 - by1, 1.0) / RESOLUTION
    centers = jnp.arange(RESOLUTION, dtype=jnp.float32) + 0.5
    ys = by1[:, None, :] + centers[None, :, None] * bin_h[:, None, :]  # (NI,R,NROI)
    xs = bx1[:, None, :] + centers[None, :, None] * bin_w[:, None, :]
    yy = jnp.broadcast_to(ys[:, :, None, :], (ni, RESOLUTION, RESOLUTION, nroi))
    xx = jnp.broadcast_to(xs[:, None, :, :], (ni, RESOLUTION, RESOLUTION, nroi))
    y = jnp.clip(yy, 0.0, fh - 1.0)
    x = jnp.clip(xx, 0.0, fw - 1.0)
    y0f = jnp.floor(y)
    x0f = jnp.floor(x)
    y0 = y0f.astype(jnp.int32)
    x0 = x0f.astype(jnp.int32)
    y1i = jnp.minimum(y0 + 1, fh - 1)
    x1i = jnp.minimum(x0 + 1, fw - 1)
    ly = y - y0f
    lx = x - x0f
    idx = jnp.stack([y0 * fw + x0, y0 * fw + x1i,
                     y1i * fw + x0, y1i * fw + x1i], axis=-1)
    wts = jnp.stack([(1 - ly) * (1 - lx), (1 - ly) * lx,
                     ly * (1 - lx), ly * lx], axis=-1)
    onehot = jax.nn.one_hot(idx, fh * fw, dtype=jnp.float32)    # (...,4,HW)
    interp = jnp.sum(onehot * wts[..., None], axis=-2)          # (NI,R,R,NROI,HW)
    return interp.reshape(ni, NUM_BINS * nroi, fh * fw)


# ----------------------------- parameter handling -----------------------------
def init_params(key):
    ks = jax.random.split(key, 8)
    s = 0.02
    return {
        # box_feature_extractor (fc6, fc7) — torch layout: fc6 rows (C, h, w)
        "box_w1": s * jax.random.normal(ks[0], (POOL_DIM, HIDDEN), jnp.float32),
        "box_b1": jnp.zeros((HIDDEN,), jnp.float32),
        "box_w2": s * jax.random.normal(ks[1], (HIDDEN, HIDDEN), jnp.float32),
        "box_b2": jnp.zeros((HIDDEN,), jnp.float32),
        # union_feature_extractor head
        "uni_w1": s * jax.random.normal(ks[2], (POOL_DIM, HIDDEN), jnp.float32),
        "uni_b1": jnp.zeros((HIDDEN,), jnp.float32),
        "uni_w2": s * jax.random.normal(ks[3], (HIDDEN, HIDDEN), jnp.float32),
        "uni_b2": jnp.zeros((HIDDEN,), jnp.float32),
        # predictor: object classifier -> refine_logits
        "obj_w": s * jax.random.normal(ks[4], (HIDDEN, NUM_OBJ_CLS), jnp.float32),
        "obj_b": jnp.zeros((NUM_OBJ_CLS,), jnp.float32),
        # predictor: post_cat (pair concat -> pooling_dim) and rel_compress
        "post_w": s * jax.random.normal(ks[5], (2 * HIDDEN, HIDDEN), jnp.float32),
        "post_b": jnp.zeros((HIDDEN,), jnp.float32),
        "rel_w": s * jax.random.normal(ks[6], (HIDDEN, NUM_REL_CLS), jnp.float32),
        "rel_b": jnp.zeros((NUM_REL_CLS,), jnp.float32),
    }


def _chw_rows_to_hwc_rows(w):
    """Torch pooled features flatten as (C, h, w); the kernel pools in
    (h, w, C) bin-major order — permute fc6 weight rows once (exact)."""
    w = w.reshape(IN_CHANNELS, RESOLUTION, RESOLUTION, -1)
    w = jnp.transpose(w, (1, 2, 0, 3))
    return w.reshape(POOL_DIM, -1)


def prepare_kernel_params(p):
    """One-time layout plumbing: permute fc6 rows, laterally concatenate the
    box/union and obj/rel weight pairs (256-wide MXU fill), pad classifier
    columns to 128 lanes, cast MXU operands to bf16, stack biases."""
    def pad_cls(w, bias, width):
        c = w.shape[1]
        wp = jnp.pad(w, ((0, 0), (0, width - c)))
        bp = jnp.concatenate([bias, jnp.full((width - c,), NEG_INF, jnp.float32)])
        return wp, bp

    w1_cat = jnp.concatenate([_chw_rows_to_hwc_rows(p["box_w1"]),
                              _chw_rows_to_hwc_rows(p["uni_w1"])], axis=1)
    w2_cat = jnp.concatenate([p["box_w2"], p["uni_w2"]], axis=1)
    post_w_cat = jnp.concatenate([p["post_w"][:HIDDEN, :],
                                  p["post_w"][HIDDEN:, :]], axis=1)
    obj_w, obj_b = pad_cls(p["obj_w"], p["obj_b"], LANE)
    rel_w, rel_b = pad_cls(p["rel_w"], p["rel_b"], LANE)
    cls_w_cat = jnp.concatenate([obj_w, rel_w], axis=1)

    biases = jnp.zeros((SUB, 2 * LANE), jnp.float32)
    biases = biases.at[0].set(jnp.concatenate([p["box_b1"], p["uni_b1"]]))
    biases = biases.at[1].set(jnp.concatenate([p["box_b2"], p["uni_b2"]]))
    biases = biases.at[2].set(jnp.concatenate([obj_b, rel_b]))
    biases = biases.at[3, :HIDDEN].set(p["post_b"])
    return {
        "w1_cat": w1_cat.astype(jnp.bfloat16),
        "w2_cat": w2_cat.astype(jnp.bfloat16),
        "post_w_cat": post_w_cat.astype(jnp.bfloat16),
        "cls_w_cat": cls_w_cat.astype(jnp.bfloat16),
        "biases": biases,
    }


# ------------------------------- forward pass ---------------------------------
def roi_relation_head_forward(kparams, features_nchw, boxes_per_img,
                              rel_pair_idxs_per_img):
    """Inference forward.  features_nchw: (num_imgs, C, H, W) single FPN level.
    boxes_per_img: (num_imgs, nb, 4); rel_pair_idxs_per_img: (num_imgs, np, 2)."""
    ni, _, fh, fw = features_nchw.shape
    feat = jnp.transpose(features_nchw, (0, 2, 3, 1)).reshape(
        ni, fh * fw, IN_CHANNELS).astype(jnp.bfloat16)

    nb = boxes_per_img.shape[1]
    npairs = rel_pair_idxs_per_img.shape[1]
    nbp = _round_up(nb, SUB)
    npp = _round_up(npairs, SUB)

    # union boxes + pair one-hots (tiny per-box coordinate/index math in JAX)
    img_ar = jnp.arange(ni)[:, None]
    sub_boxes = boxes_per_img[img_ar, rel_pair_idxs_per_img[..., 0]]
    obj_boxes = boxes_per_img[img_ar, rel_pair_idxs_per_img[..., 1]]
    union_boxes = jnp.concatenate(
        [jnp.minimum(sub_boxes[..., :2], obj_boxes[..., :2]),
         jnp.maximum(sub_boxes[..., 2:], obj_boxes[..., 2:])], axis=-1)

    rois = jnp.concatenate(
        [jnp.pad(boxes_per_img, ((0, 0), (0, nbp - nb), (0, 0))),
         jnp.pad(union_boxes, ((0, 0), (0, npp - npairs), (0, 0)))], axis=1)
    interp = build_interp(rois, fh, fw).astype(jnp.bfloat16)

    sub_oh = jax.nn.one_hot(rel_pair_idxs_per_img[..., 0], nbp, dtype=jnp.float32)
    obj_oh = jax.nn.one_hot(rel_pair_idxs_per_img[..., 1], nbp, dtype=jnp.float32)
    pair_oh = jnp.pad(jnp.concatenate([sub_oh, obj_oh], axis=-1),
                      ((0, 0), (0, npp - npairs), (0, 0))).astype(jnp.bfloat16)

    roi_pad, obj_pad, rel_pad = relation_head_pallas(
        kparams, feat, interp, pair_oh, nbp, npp)

    roi_features = roi_pad[:, :nb].reshape(ni * nb, HIDDEN)
    obj_probs = obj_pad[:, :nb, :NUM_OBJ_CLS].reshape(ni * nb, NUM_OBJ_CLS)
    rel_probs = rel_pad[:, :npairs, :NUM_REL_CLS].reshape(ni * npairs, NUM_REL_CLS)
    result = (rel_probs, obj_probs, rel_pair_idxs_per_img)
    return roi_features, result, {}


# ------------------------------------ main ------------------------------------
if __name__ == "__main__":
    key = jax.random.PRNGKey(0)
    k_feat, k_param = jax.random.split(key)

    # features: single FPN level, NCHW (PyTorch layout)
    features = jax.random.normal(
        k_feat, (NUM_IMAGES, IN_CHANNELS, FEAT_H, FEAT_W), jnp.float32)

    # 4 deterministic proposal boxes per image (image size 64x64)
    base = jnp.array([[4.0, 4.0, 28.0, 28.0],
                      [16.0, 8.0, 48.0, 40.0],
                      [32.0, 32.0, 60.0, 60.0],
                      [8.0, 36.0, 40.0, 62.0]], jnp.float32)
    boxes_per_img = jnp.stack([base, base + 2.0], axis=0)          # (2, 4, 4)

    # all ordered pairs i != j per image (prepare_test_pairs): 12 pairs/image
    pairs = jnp.array([(i, j) for i in range(4) for j in range(4) if i != j],
                      jnp.int32)
    rel_pair_idxs = jnp.stack([pairs, pairs], axis=0)              # (2, 12, 2)

    params = init_params(k_param)
    kparams = prepare_kernel_params(params)

    fwd = jax.jit(functools.partial(roi_relation_head_forward, kparams))
    roi_features, result, losses = fwd(features, boxes_per_img, rel_pair_idxs)
    jax.block_until_ready((roi_features, result))

    rel_probs, obj_probs, _ = result
    assert roi_features.shape == (NUM_IMAGES * 4, HIDDEN)
    assert rel_probs.shape == (NUM_IMAGES * 12, NUM_REL_CLS)
    assert obj_probs.shape == (NUM_IMAGES * 4, NUM_OBJ_CLS)
    assert losses == {}
    # exact in-kernel softmax: rows sum to 1 (f32 rounding only)
    assert float(jnp.max(jnp.abs(jnp.sum(rel_probs, axis=-1) - 1.0))) < 1e-3
    assert float(jnp.max(jnp.abs(jnp.sum(obj_probs, axis=-1) - 1.0))) < 1e-3
    assert bool(jnp.all(jnp.isfinite(roi_features)))
    print("KERNEL_OK")
</pallas_src>

<mosaic_0001>
module attributes {stable_mosaic.version = 11 : i64} {
  func.func @relation_head_kernel(%arg0: i32, %arg1: memref<1x256x16xbf16, #tpu.memory_space<vmem>>, %arg2: memref<1x384x256xbf16, #tpu.memory_space<vmem>>, %arg3: memref<1x16x16xbf16, #tpu.memory_space<vmem>>, %arg4: memref<256x256xbf16, #tpu.memory_space<vmem>>, %arg5: memref<128x256xbf16, #tpu.memory_space<vmem>>, %arg6: memref<128x256xbf16, #tpu.memory_space<vmem>>, %arg7: memref<128x256xbf16, #tpu.memory_space<vmem>>, %arg8: memref<8x256xf32, #tpu.memory_space<vmem>>, %arg9: memref<1x8x128xf32, #tpu.memory_space<vmem>>, %arg10: memref<1x8x128xf32, #tpu.memory_space<vmem>>, %arg11: memref<1x16x128xf32, #tpu.memory_space<vmem>>) attributes {dimension_semantics = [#tpu.dimension_semantics<parallel>], iteration_bounds = array<i64: 2>, scalar_prefetch = 0 : i64, scratch_operands = 0 : i64, tpu.core_type = #tpu.core_type<tc>, window_params = [{transform_indices = @transform_0, window_bounds = array<i64: 1, 256, 16>}, {transform_indices = @transform_1, window_bounds = array<i64: 1, 384, 256>}, {transform_indices = @transform_2, window_bounds = array<i64: 1, 16, 16>}, {pipeline_mode = #tpu.pipeline_mode<synchronous>, transform_indices = @transform_3, window_bounds = array<i64: 256, 256>}, {pipeline_mode = #tpu.pipeline_mode<synchronous>, transform_indices = @transform_4, window_bounds = array<i64: 128, 256>}, {pipeline_mode = #tpu.pipeline_mode<synchronous>, transform_indices = @transform_5, window_bounds = array<i64: 128, 256>}, {pipeline_mode = #tpu.pipeline_mode<synchronous>, transform_indices = @transform_6, window_bounds = array<i64: 128, 256>}, {pipeline_mode = #tpu.pipeline_mode<synchronous>, transform_indices = @transform_7, window_bounds = array<i64: 8, 256>}, {transform_indices = @transform_8, window_bounds = array<i64: 1, 8, 128>}, {transform_indices = @transform_9, window_bounds = array<i64: 1, 8, 128>}, {transform_indices = @transform_10, window_bounds = array<i64: 1, 16, 128>}]} {
    %c0 = arith.constant 0 : index
    %c0_0 = arith.constant 0 : index
    %c0_1 = arith.constant 0 : index
    %0 = vector.load %arg1[%c0, %c0_0, %c0_1] : memref<1x256x16xbf16, #tpu.memory_space<vmem>>, vector<1x256x16xbf16>
    %1 = vector.shape_cast %0 : vector<1x256x16xbf16> to vector<256x16xbf16>
    %c0_2 = arith.constant 0 : index
    %c0_3 = arith.constant 0 : index
    %c0_4 = arith.constant 0 : index
    %2 = vector.load %arg2[%c0_2, %c0_3, %c0_4] : memref<1x384x256xbf16, #tpu.memory_space<vmem>>, vector<1x384x256xbf16>
    %3 = vector.shape_cast %2 : vector<1x384x256xbf16> to vector<384x256xbf16>
    %cst = arith.constant dense<0.000000e+00> : vector<384x16xf32>
    %4 = tpu.matmul %3, %1, %cst {dimension_numbers = #tpu.dot_dimension_numbers<[1], [0], [0], [1], [0, 0, 1, 1], [], []>} : vector<384x256xbf16>, vector<256x16xbf16>, vector<384x16xf32> -> vector<384x16xf32>
    %5 = vector.shape_cast %4 : vector<384x16xf32> to vector<16x24x16xf32>
    %6 = arith.truncf %5 : vector<16x24x16xf32> to vector<16x24x16xbf16>
    %c0_5 = arith.constant 0 : index
    %c0_6 = arith.constant 0 : index
    %7 = vector.load %arg4[%c0_5, %c0_6] : memref<256x256xbf16, #tpu.memory_space<vmem>>, vector<256x256xbf16>
    %8 = vector.shape_cast %7 : vector<256x256xbf16> to vector<16x16x256xbf16>
    "tpu.trace_start"() <{level = 10 : i32, message = "bnc,bch->bnh"}> : () -> ()
    %cst_7 = arith.constant dense<0.000000e+00> : vector<16x24x256xf32>
    %9 = tpu.matmul %6, %8, %cst_7 {dimension_numbers = #tpu.dot_dimension_numbers<[2], [1], [1], [2], [0, 0, 0, 1, 1, 2], [0], [0]>} : vector<16x24x16xbf16>, vector<16x16x256xbf16>, vector<16x24x256xf32> -> vector<16x24x256xf32>
    "tpu.trace_stop"() : () -> ()
    %cst_8 = arith.constant dense<0.000000e+00> : vector<24x256xf32>
    %10 = vector.multi_reduction <add>, %9, %cst_8 [0] : vector<16x24x256xf32> to vector<24x256xf32>
    %c0_9 = arith.constant 0 : index
    %c0_10 = arith.constant 0 : index
    %11 = vector.load %arg8[%c0_9, %c0_10] : memref<8x256xf32, #tpu.memory_space<vmem>>, vector<1x256xf32>
    %12 = vector.broadcast %11 : vector<1x256xf32> to vector<24x256xf32>
    %13 = arith.addf %10, %12 : vector<24x256xf32>
    %cst_11 = arith.constant 0.000000e+00 : f32
    %14 = vector.broadcast %cst_11 : f32 to vector<24x256xf32>
    %15 = arith.maximumf %13, %14 : vector<24x256xf32>
    %16 = vector.extract_strided_slice %15 {offsets = [0, 0], sizes = [8, 128], strides = [1, 1]} : vector<24x256xf32> to vector<8x128xf32>
    %17 = vector.extract_strided_slice %15 {offsets = [8, 128], sizes = [16, 128], strides = [1, 1]} : vector<24x256xf32> to vector<16x128xf32>
    %18 = tpu.concatenate %16, %17 in 0 : vector<8x128xf32>, vector<16x128xf32> -> vector<24x128xf32>
    %19 = arith.truncf %18 : vector<24x128xf32> to vector<24x128xbf16>
    %c0_12 = arith.constant 0 : index
    %c0_13 = arith.constant 0 : index
    %20 = vector.load %arg5[%c0_12, %c0_13] : memref<128x256xbf16, #tpu.memory_space<vmem>>, vector<128x256xbf16>
    %cst_14 = arith.constant dense<0.000000e+00> : vector<24x256xf32>
    %21 = tpu.matmul %19, %20, %cst_14 {dimension_numbers = #tpu.dot_dimension_numbers<[1], [0], [0], [1], [0, 0, 1, 1], [], []>} : vector<24x128xbf16>, vector<128x256xbf16>, vector<24x256xf32> -> vector<24x256xf32>
    %c1 = arith.constant 1 : index
    %c0_15 = arith.constant 0 : index
    %22 = vector.load %arg8[%c1, %c0_15] : memref<8x256xf32, #tpu.memory_space<vmem>>, vector<1x256xf32>
    %23 = vector.broadcast %22 : vector<1x256xf32> to vector<24x256xf32>
    %24 = arith.addf %21, %23 : vector<24x256xf32>
    %cst_16 = arith.constant 0.000000e+00 : f32
    %25 = vector.broadcast %cst_16 : f32 to vector<24x256xf32>
    %26 = arith.maximumf %24, %25 : vector<24x256xf32>
    %27 = vector.extract_strided_slice %26 {offsets = [0, 0], sizes = [8, 128], strides = [1, 1]} : vector<24x256xf32> to vector<8x128xf32>
    %28 = vector.extract_strided_slice %26 {offsets = [8, 128], sizes = [16, 128], strides = [1, 1]} : vector<24x256xf32> to vector<16x128xf32>
    %c0_17 = arith.constant 0 : index
    %c0_18 = arith.constant 0 : index
    %c0_19 = arith.constant 0 : index
    %29 = vector.load %arg9[%c0_17, %c0_18, %c0_19] : memref<1x8x128xf32, #tpu.memory_space<vmem>>, vector<1x8x128xf32>
    %30 = vector.shape_cast %29 : vector<1x8x128xf32> to vector<8x128xf32>
    %31 = vector.shape_cast %27 : vector<8x128xf32> to vector<1x8x128xf32>
    tpu.vector_store %arg9[%c0_17, %c0_18, %c0_19], %31 {strides = array<i32>} : memref<1x8x128xf32, #tpu.memory_space<vmem>>, vector<1x8x128xf32>,
    %32 = arith.truncf %27 : vector<8x128xf32> to vector<8x128xbf16>
    %c0_20 = arith.constant 0 : index
    %c0_21 = arith.constant 0 : index
    %33 = vector.load %arg6[%c0_20, %c0_21] : memref<128x256xbf16, #tpu.memory_space<vmem>>, vector<128x256xbf16>
    %cst_22 = arith.constant dense<0.000000e+00> : vector<8x256xf32>
    %34 = tpu.matmul %32, %33, %cst_22 {dimension_numbers = #tpu.dot_dimension_numbers<[1], [0], [0], [1], [0, 0, 1, 1], [], []>} : vector<8x128xbf16>, vector<128x256xbf16>, vector<8x256xf32> -> vector<8x256xf32>
    %35 = vector.extract_strided_slice %34 {offsets = [0, 0], sizes = [8, 128], strides = [1, 1]} : vector<8x256xf32> to vector<8x128xf32>
    %36 = vector.extract_strided_slice %34 {offsets = [0, 128], sizes = [8, 128], strides = [1, 1]} : vector<8x256xf32> to vector<8x128xf32>
    %37 = tpu.concatenate %35, %36 in 0 : vector<8x128xf32>, vector<8x128xf32> -> vector<16x128xf32>
    %38 = arith.truncf %37 : vector<16x128xf32> to vector<16x128xbf16>
    %c0_23 = arith.constant 0 : index
    %c0_24 = arith.constant 0 : index
    %c0_25 = arith.constant 0 : index
    %39 = vector.load %arg3[%c0_23, %c0_24, %c0_25] : memref<1x16x16xbf16, #tpu.memory_space<vmem>>, vector<1x16x16xbf16>
    %40 = vector.shape_cast %39 : vector<1x16x16xbf16> to vector<16x16xbf16>
    %cst_26 = arith.constant dense<0.000000e+00> : vector<16x128xf32>
    %41 = tpu.matmul %40, %38, %cst_26 {dimension_numbers = #tpu.dot_dimension_numbers<[1], [0], [0], [1], [0, 0, 1, 1], [], []>} : vector<16x16xbf16>, vector<16x128xbf16>, vector<16x128xf32> -> vector<16x128xf32>
    %c3 = arith.constant 3 : index
    %c0_27 = arith.constant 0 : index
    %42 = vector.load %arg8[%c3, %c0_27] : memref<8x256xf32, #tpu.memory_space<vmem>>, vector<1x128xf32>
    %43 = vector.broadcast %42 : vector<1x128xf32> to vector<16x128xf32>
    %44 = arith.addf %41, %43 : vector<16x128xf32>
    %cst_28 = arith.constant 0.000000e+00 : f32
    %45 = vector.broadcast %cst_28 : f32 to vector<16x128xf32>
    %46 = arith.maximumf %44, %45 : vector<16x128xf32>
    %47 = arith.mulf %46, %28 : vector<16x128xf32>
    %48 = tpu.concatenate %27, %47 in 0 : vector<8x128xf32>, vector<16x128xf32> -> vector<24x128xf32>
    %49 = arith.truncf %48 : vector<24x128xf32> to vector<24x128xbf16>
    %c0_29 = arith.constant 0 : index
    %c0_30 = arith.constant 0 : index
    %50 = vector.load %arg7[%c0_29, %c0_30] : memref<128x256xbf16, #tpu.memory_space<vmem>>, vector<128x256xbf16>
    %cst_31 = arith.constant dense<0.000000e+00> : vector<24x256xf32>
    %51 = tpu.matmul %49, %50, %cst_31 {dimension_numbers = #tpu.dot_dimension_numbers<[1], [0], [0], [1], [0, 0, 1, 1], [], []>} : vector<24x128xbf16>, vector<128x256xbf16>, vector<24x256xf32> -> vector<24x256xf32>
    %c2 = arith.constant 2 : index
    %c0_32 = arith.constant 0 : index
    %52 = vector.load %arg8[%c2, %c0_32] : memref<8x256xf32, #tpu.memory_space<vmem>>, vector<1x256xf32>
    %53 = vector.broadcast %52 : vector<1x256xf32> to vector<24x256xf32>
    %54 = arith.addf %51, %53 : vector<24x256xf32>
    %55 = vector.extract_strided_slice %54 {offsets = [0, 0], sizes = [8, 128], strides = [1, 1]} : vector<24x256xf32> to vector<8x128xf32>
    %cst_33 = arith.constant dense<0xFF800000> : vector<8xf32>
    %56 = vector.multi_reduction <maximumf>, %55, %cst_33 [1] : vector<8x128xf32> to vector<8xf32>
    %57 = vector.shape_cast %56 : vector<8xf32> to vector<8x1xf32>
    %58 = vector.broadcast %57 : vector<8x1xf32> to vector<8x128xf32>
    %59 = arith.subf %55, %58 : vector<8x128xf32>
    %60 = math.exp %59 : vector<8x128xf32>
    %cst_34 = arith.constant dense<0.000000e+00> : vector<8xf32>
    %61 = vector.multi_reduction <add>, %60, %cst_34 [1] : vector<8x128xf32> to vector<8xf32>
    %62 = vector.shape_cast %61 : vector<8xf32> to vector<8x1xf32>
    %63 = vector.broadcast %62 : vector<8x1xf32> to vector<8x128xf32>
    %64 = arith.divf %60, %63 : vector<8x128xf32>
    %c0_35 = arith.constant 0 : index
    %c0_36 = arith.constant 0 : index
    %c0_37 = arith.constant 0 : index
    %65 = vector.load %arg10[%c0_35, %c0_36, %c0_37] : memref<1x8x128xf32, #tpu.memory_space<vmem>>, vector<1x8x128xf32>
    %66 = vector.shape_cast %65 : vector<1x8x128xf32> to vector<8x128xf32>
    %67 = vector.shape_cast %64 : vector<8x128xf32> to vector<1x8x128xf32>
    tpu.vector_store %arg10[%c0_35, %c0_36, %c0_37], %67 {strides = array<i32>} : memref<1x8x128xf32, #tpu.memory_space<vmem>>, vector<1x8x128xf32>,
    %68 = vector.extract_strided_slice %54 {offsets = [8, 128], sizes = [16, 128], strides = [1, 1]} : vector<24x256xf32> to vector<16x128xf32>
    %cst_38 = arith.constant dense<0xFF800000> : vector<16xf32>
    %69 = vector.multi_reduction <maximumf>, %68, %cst_38 [1] : vector<16x128xf32> to vector<16xf32>
    %70 = vector.shape_cast %69 : vector<16xf32> to vector<16x1xf32>
    %71 = vector.broadcast %70 : vector<16x1xf32> to vector<16x128xf32>
    %72 = arith.subf %68, %71 : vector<16x128xf32>
    %73 = math.exp %72 : vector<16x128xf32>
    %cst_39 = arith.constant dense<0.000000e+00> : vector<16xf32>
    %74 = vector.multi_reduction <add>, %73, %cst_39 [1] : vector<16x128xf32> to vector<16xf32>
    %75 = vector.shape_cast %74 : vector<16xf32> to vector<16x1xf32>
    %76 = vector.broadcast %75 : vector<16x1xf32> to vector<16x128xf32>
    %77 = arith.divf %73, %76 : vector<16x128xf32>
    %c0_40 = arith.constant 0 : index
    %c0_41 = arith.constant 0 : index
    %c0_42 = arith.constant 0 : index
    %78 = vector.load %arg11[%c0_40, %c0_41, %c0_42] : memref<1x16x128xf32, #tpu.memory_space<vmem>>, vector<1x16x128xf32>
    %79 = vector.shape_cast %78 : vector<1x16x128xf32> to vector<16x128xf32>
    %80 = vector.shape_cast %77 : vector<16x128xf32> to vector<1x16x128xf32>
    tpu.vector_store %arg11[%c0_40, %c0_41, %c0_42], %80 {strides = array<i32>} : memref<1x16x128xf32, #tpu.memory_space<vmem>>, vector<1x16x128xf32>,
    return
  }
  func.func @transform_0(%arg0: i32) -> (i32, i32, i32) {
    %c0_i32 = arith.constant 0 : i32
    %c0_i32_0 = arith.constant 0 : i32
    %c0_i32_1 = arith.constant 0 : i32
    return %arg0, %c0_i32, %c0_i32_0 : i32, i32, i32
  }
  func.func @transform_1(%arg0: i32) -> (i32, i32, i32) {
    %c0_i32 = arith.constant 0 : i32
    %c0_i32_0 = arith.constant 0 : i32
    %c0_i32_1 = arith.constant 0 : i32
    return %arg0, %c0_i32, %c0_i32_0 : i32, i32, i32
  }
  func.func @transform_2(%arg0: i32) -> (i32, i32, i32) {
    %c0_i32 = arith.constant 0 : i32
    %c0_i32_0 = arith.constant 0 : i32
    %c0_i32_1 = arith.constant 0 : i32
    return %arg0, %c0_i32, %c0_i32_0 : i32, i32, i32
  }
  func.func @transform_3(%arg0: i32) -> (i32, i32) {
    %c0_i32 = arith.constant 0 : i32
    %c0_i32_0 = arith.constant 0 : i32
    %c0_i32_1 = arith.constant 0 : i32
    return %c0_i32, %c0_i32_0 : i32, i32
  }
  func.func @transform_4(%arg0: i32) -> (i32, i32) {
    %c0_i32 = arith.constant 0 : i32
    %c0_i32_0 = arith.constant 0 : i32
    %c0_i32_1 = arith.constant 0 : i32
    return %c0_i32, %c0_i32_0 : i32, i32
  }
  func.func @transform_5(%arg0: i32) -> (i32, i32) {
    %c0_i32 = arith.constant 0 : i32
    %c0_i32_0 = arith.constant 0 : i32
    %c0_i32_1 = arith.constant 0 : i32
    return %c0_i32, %c0_i32_0 : i32, i32
  }
  func.func @transform_6(%arg0: i32) -> (i32, i32) {
    %c0_i32 = arith.constant 0 : i32
    %c0_i32_0 = arith.constant 0 : i32
    %c0_i32_1 = arith.constant 0 : i32
    return %c0_i32, %c0_i32_0 : i32, i32
  }
  func.func @transform_7(%arg0: i32) -> (i32, i32) {
    %c0_i32 = arith.constant 0 : i32
    %c0_i32_0 = arith.constant 0 : i32
    %c0_i32_1 = arith.constant 0 : i32
    return %c0_i32, %c0_i32_0 : i32, i32
  }
  func.func @transform_8(%arg0: i32) -> (i32, i32, i32) {
    %c0_i32 = arith.constant 0 : i32
    %c0_i32_0 = arith.constant 0 : i32
    %c0_i32_1 = arith.constant 0 : i32
    return %arg0, %c0_i32, %c0_i32_0 : i32, i32, i32
  }
  func.func @transform_9(%arg0: i32) -> (i32, i32, i32) {
    %c0_i32 = arith.constant 0 : i32
    %c0_i32_0 = arith.constant 0 : i32
    %c0_i32_1 = arith.constant 0 : i32
    return %arg0, %c0_i32, %c0_i32_0 : i32, i32, i32
  }
  func.func @transform_10(%arg0: i32) -> (i32, i32, i32) {
    %c0_i32 = arith.constant 0 : i32
    %c0_i32_0 = arith.constant 0 : i32
    %c0_i32_1 = arith.constant 0 : i32
    return %arg0, %c0_i32, %c0_i32_0 : i32, i32, i32
  }
}

</mosaic_0001>

<llo_original>
// kernel: roi_relation_head_forward.1
$region0: #{roi_relation_head_forward.1}
  #allocation0 [shape = 'u32[]', space=smem, size = 0x4, offset = 0x4, fixed_abs, tag = 'smem constant byte address 0x4 - core index']
  #allocation1 [shape = 'u32[144,128]{1,0:T(1,128)}', space=vmem, size = 0x12000, scoped, tag = 'internal scratch']
  %s0 = inlined_call_operand.vmem [shape: bf16[2,256,16], index: 0, kind: input, shape index: {}]
  %s1 = inlined_call_operand.vmem [shape: bf16[2,384,256], index: 1, kind: input, shape index: {}]
  %s2 = inlined_call_operand.vmem [shape: bf16[2,16,16], index: 2, kind: input, shape index: {}]
  %s3 = inlined_call_operand.vmem [shape: bf16[256,256], index: 3, kind: input, shape index: {}]
  %s4 = inlined_call_operand.vmem [shape: bf16[128,256], index: 4, kind: input, shape index: {}]
  %s5 = inlined_call_operand.vmem [shape: bf16[128,256], index: 5, kind: input, shape index: {}]
  %s6 = inlined_call_operand.vmem [shape: bf16[128,256], index: 6, kind: input, shape index: {}]
  %s7 = inlined_call_operand.vmem [shape: f32[8,256], index: 7, kind: input, shape index: {}]
  %s8 = inlined_call_operand.vmem [shape: f32[2,8,128], index: 8, kind: output, shape index: {0}]
  %s9 = inlined_call_operand.vmem [shape: f32[2,8,128], index: 9, kind: output, shape index: {1}]
  %s10 = inlined_call_operand.vmem [shape: f32[2,16,128], index: 10, kind: output, shape index: {2}]
  %11 = xla_tuple %s8, %s9, %s10
  %s12 = sld [smem:[#allocation0]]
  $region81: #{roi_relation_head_forward.1} parent=0
    _
  %s14 = ssub.s32 1, %s12
  %s15 = scalar_select 0, %s14, %s12
  loop: start=0, step=1, limit=4
  $region2: #{roi_relation_head_forward.1} parent=0 // loop_pre_header
    _
  $region3: #{roi_relation_head_forward.1} parent=0 // loop_header
    %s17 = sphi 0, %s21
    %p18 = scmp.ge.s32.totalorder %s17, 4
    %s27 = sphi 0, %s29
    %s30 = sphi 0, %s27
    %s31 = sphi 0, %s30
    %s47 = sphi 0, %s31
    %s53 = sphi 0, %s55
    %s56 = sphi 0, %s53
    %s57 = sphi 0, %s56
    %s73 = sphi 0, %s57
    %s79 = sphi 0, %s81
    %s82 = sphi 0, %s79
    %s83 = sphi 0, %s82
    %s99 = sphi 0, %s83
    %s103 = sphi 0, %s103
    %s105 = sphi 0, %s103
    %s106 = sphi 0, %s105
    %s120 = sphi 0, %s106
    %s124 = sphi 0, %s124
    %s126 = sphi 0, %s124
    %s127 = sphi 0, %s126
    %s141 = sphi 0, %s127
    %s145 = sphi 0, %s145
    %s147 = sphi 0, %s145
    %s148 = sphi 0, %s147
    %s162 = sphi 0, %s148
    %s166 = sphi 0, %s166
    %s168 = sphi 0, %s166
    %s169 = sphi 0, %s168
    %s183 = sphi 0, %s169
    %s187 = sphi 0, %s187
    %s189 = sphi 0, %s187
    %s190 = sphi 0, %s189
    %s204 = sphi 0, %s190
    %s210 = sphi 0, %s212
    %s213 = sphi 0, %s210
    %s214 = sphi 0, %s213
    %s230 = sphi 0, %s214
    %s236 = sphi 0, %s238
    %s239 = sphi 0, %s236
    %s240 = sphi 0, %s239
    %s256 = sphi 0, %s240
    %s262 = sphi 0, %s264
    %s265 = sphi 0, %s262
    %s266 = sphi 0, %s265
    %s282 = sphi 0, %s266
  $region4: #{roi_relation_head_forward.1} parent=0 // loop_header_branch
    %20 = sbr.rel (%p18) target = $region8
  $region5: #{roi_relation_head_forward.1} parent=0 // loop_body
    %s22 = ssub.s32 %s17, 1
    %s23 = ssub.s32 %s17, 2
    %s24 = sadd.s32 %s17, 1
    %s25 = ssub.s32 %s17, %s24
    %p26 = scmp.eq.s32.totalorder %s25, 0
    %s28 = sadd.s32 %s27, 1
    %s29 = scalar_select %p26, %s27, %s28
    %p32 = pneg %p26
    %p33 = scmp.eq.s32.totalorder %s17, 1
    %p34 = por %p32, %p33
    %p35 = scmp.ne.s32.totalorder %s27, %s30
    %p36 = scmp.eq.s32.totalorder %s17, 0
    %p37 = por %p35, %p36
    %p38 = scmp.ne.s32.totalorder %s27, %s30
    %p39 = scmp.eq.s32.totalorder %s22, 1
    %p40 = por %p38, %p39
    %p41 = scmp.ne.s32.totalorder %s30, %s31
    %p42 = scmp.eq.s32.totalorder %s22, 0
    %p43 = por %p41, %p42
    %p44 = scmp.ne.s32.totalorder %s30, %s31
    %p45 = scmp.eq.s32.totalorder %s23, 1
    %p46 = por %p44, %p45
    %p48 = scmp.ne.s32.totalorder %s31, %s47
    %p49 = scmp.eq.s32.totalorder %s23, 0
    %p50 = por %p48, %p49
    %s51 = ssub.s32 %s17, %s24
    %p52 = scmp.eq.s32.totalorder %s51, 0
    %s54 = sadd.s32 %s53, 1
    %s55 = scalar_select %p52, %s53, %s54
    %p58 = pneg %p52
    %p59 = scmp.eq.s32.totalorder %s17, 1
    %p60 = por %p58, %p59
    %p61 = scmp.ne.s32.totalorder %s53, %s56
    %p62 = scmp.eq.s32.totalorder %s17, 0
    %p63 = por %p61, %p62
    %p64 = scmp.ne.s32.totalorder %s53, %s56
    %p65 = scmp.eq.s32.totalorder %s22, 1
    %p66 = por %p64, %p65
    %p67 = scmp.ne.s32.totalorder %s56, %s57
    %p68 = scmp.eq.s32.totalorder %s22, 0
    %p69 = por %p67, %p68
    %p70 = scmp.ne.s32.totalorder %s56, %s57
    %p71 = scmp.eq.s32.totalorder %s23, 1
    %p72 = por %p70, %p71
    %p74 = scmp.ne.s32.totalorder %s57, %s73
    %p75 = scmp.eq.s32.totalorder %s23, 0
    %p76 = por %p74, %p75
    %s77 = ssub.s32 %s17, %s24
    %p78 = scmp.eq.s32.totalorder %s77, 0
    %s80 = sadd.s32 %s79, 1
    %s81 = scalar_select %p78, %s79, %s80
    %p84 = pneg %p78
    %p85 = scmp.eq.s32.totalorder %s17, 1
    %p86 = por %p84, %p85
    %p87 = scmp.ne.s32.totalorder %s79, %s82
    %p88 = scmp.eq.s32.totalorder %s17, 0
    %p89 = por %p87, %p88
    %p90 = scmp.ne.s32.totalorder %s79, %s82
    %p91 = scmp.eq.s32.totalorder %s22, 1
    %p92 = por %p90, %p91
    %p93 = scmp.ne.s32.totalorder %s82, %s83
    %p94 = scmp.eq.s32.totalorder %s22, 0
    %p95 = por %p93, %p94
    %p96 = scmp.ne.s32.totalorder %s82, %s83
    %p97 = scmp.eq.s32.totalorder %s23, 1
    %p98 = por %p96, %p97
    %p100 = scmp.ne.s32.totalorder %s83, %s99
    %p101 = scmp.eq.s32.totalorder %s23, 0
    %p102 = por %p100, %p101
    %s104 = sadd.s32 %s103, 1
    %p107 = scmp.eq.s32.totalorder %s17, 1
    %p108 = scmp.ne.s32.totalorder %s103, %s105
    %p109 = scmp.eq.s32.totalorder %s17, 0
    %p110 = por %p108, %p109
    %p111 = scmp.ne.s32.totalorder %s103, %s105
    %p112 = scmp.eq.s32.totalorder %s22, 1
    %p113 = por %p111, %p112
    %p114 = scmp.ne.s32.totalorder %s105, %s106
    %p115 = scmp.eq.s32.totalorder %s22, 0
    %p116 = por %p114, %p115
    %p117 = scmp.ne.s32.totalorder %s105, %s106
    %p118 = scmp.eq.s32.totalorder %s23, 1
    %p119 = por %p117, %p118
    %p121 = scmp.ne.s32.totalorder %s106, %s120
    %p122 = scmp.eq.s32.totalorder %s23, 0
    %p123 = por %p121, %p122
    %s125 = sadd.s32 %s124, 1
    %p128 = scmp.eq.s32.totalorder %s17, 1
    %p129 = scmp.ne.s32.totalorder %s124, %s126
    %p130 = scmp.eq.s32.totalorder %s17, 0
    %p131 = por %p129, %p130
    %p132 = scmp.ne.s32.totalorder %s124, %s126
    %p133 = scmp.eq.s32.totalorder %s22, 1
    %p134 = por %p132, %p133
    %p135 = scmp.ne.s32.totalorder %s126, %s127
    %p136 = scmp.eq.s32.totalorder %s22, 0
    %p137 = por %p135, %p136
    %p138 = scmp.ne.s32.totalorder %s126, %s127
    %p139 = scmp.eq.s32.totalorder %s23, 1
    %p140 = por %p138, %p139
    %p142 = scmp.ne.s32.totalorder %s127, %s141
    %p143 = scmp.eq.s32.totalorder %s23, 0
    %p144 = por %p142, %p143
    %s146 = sadd.s32 %s145, 1
    %p149 = scmp.eq.s32.totalorder %s17, 1
    %p150 = scmp.ne.s32.totalorder %s145, %s147
    %p151 = scmp.eq.s32.totalorder %s17, 0
    %p152 = por %p150, %p151
    %p153 = scmp.ne.s32.totalorder %s145, %s147
    %p154 = scmp.eq.s32.totalorder %s22, 1
    %p155 = por %p153, %p154
    %p156 = scmp.ne.s32.totalorder %s147, %s148
    %p157 = scmp.eq.s32.totalorder %s22, 0
    %p158 = por %p156, %p157
    %p159 = scmp.ne.s32.totalorder %s147, %s148
    %p160 = scmp.eq.s32.totalorder %s23, 1
    %p161 = por %p159, %p160
    %p163 = scmp.ne.s32.totalorder %s148, %s162
    %p164 = scmp.eq.s32.totalorder %s23, 0
    %p165 = por %p163, %p164
    %s167 = sadd.s32 %s166, 1
    %p170 = scmp.eq.s32.totalorder %s17, 1
    %p171 = scmp.ne.s32.totalorder %s166, %s168
    %p172 = scmp.eq.s32.totalorder %s17, 0
    %p173 = por %p171, %p172
    %p174 = scmp.ne.s32.totalorder %s166, %s168
    %p175 = scmp.eq.s32.totalorder %s22, 1
    %p176 = por %p174, %p175
    %p177 = scmp.ne.s32.totalorder %s168, %s169
    %p178 = scmp.eq.s32.totalorder %s22, 0
    %p179 = por %p177, %p178
    %p180 = scmp.ne.s32.totalorder %s168, %s169
    %p181 = scmp.eq.s32.totalorder %s23, 1
    %p182 = por %p180, %p181
    %p184 = scmp.ne.s32.totalorder %s169, %s183
    %p185 = scmp.eq.s32.totalorder %s23, 0
    %p186 = por %p184, %p185
    %s188 = sadd.s32 %s187, 1
    %p191 = scmp.eq.s32.totalorder %s17, 1
    %p192 = scmp.ne.s32.totalorder %s187, %s189
    %p193 = scmp.eq.s32.totalorder %s17, 0
    %p194 = por %p192, %p193
    %p195 = scmp.ne.s32.totalorder %s187, %s189
    %p196 = scmp.eq.s32.totalorder %s22, 1
    %p197 = por %p195, %p196
    %p198 = scmp.ne.s32.totalorder %s189, %s190
    %p199 = scmp.eq.s32.totalorder %s22, 0
    %p200 = por %p198, %p199
    %p201 = scmp.ne.s32.totalorder %s189, %s190
    %p202 = scmp.eq.s32.totalorder %s23, 1
    %p203 = por %p201, %p202
    %p205 = scmp.ne.s32.totalorder %s190, %s204
    %p206 = scmp.eq.s32.totalorder %s23, 0
    %p207 = por %p205, %p206
    %s208 = ssub.s32 %s17, %s24
    %p209 = scmp.eq.s32.totalorder %s208, 0
    %s211 = sadd.s32 %s210, 1
    %s212 = scalar_select %p209, %s210, %s211
    %p215 = pneg %p209
    %p216 = scmp.eq.s32.totalorder %s17, 1
    %p217 = por %p215, %p216
    %p218 = scmp.ne.s32.totalorder %s210, %s213
    %p219 = scmp.eq.s32.totalorder %s17, 0
    %p220 = por %p218, %p219
    %p221 = scmp.ne.s32.totalorder %s210, %s213
    %p222 = scmp.eq.s32.totalorder %s22, 1
    %p223 = por %p221, %p222
    %p224 = scmp.ne.s32.totalorder %s213, %s214
    %p225 = scmp.eq.s32.totalorder %s22, 0
    %p226 = por %p224, %p225
    %p227 = scmp.ne.s32.totalorder %s213, %s214
    %p228 = scmp.eq.s32.totalorder %s23, 1
    %p229 = por %p227, %p228
    %p231 = scmp.ne.s32.totalorder %s214, %s230
    %p232 = scmp.eq.s32.totalorder %s23, 0
    %p233 = por %p231, %p232
    %s234 = ssub.s32 %s17, %s24
    %p235 = scmp.eq.s32.totalorder %s234, 0
    %s237 = sadd.s32 %s236, 1
    %s238 = scalar_select %p235, %s236, %s237
    %p241 = pneg %p235
    %p242 = scmp.eq.s32.totalorder %s17, 1
    %p243 = por %p241, %p242
    %p244 = scmp.ne.s32.totalorder %s236, %s239
    %p245 = scmp.eq.s32.totalorder %s17, 0
    %p246 = por %p244, %p245
    %p247 = scmp.ne.s32.totalorder %s236, %s239
    %p248 = scmp.eq.s32.totalorder %s22, 1
    %p249 = por %p247, %p248
    %p250 = scmp.ne.s32.totalorder %s239, %s240
    %p251 = scmp.eq.s32.totalorder %s22, 0
    %p252 = por %p250, %p251
    %p253 = scmp.ne.s32.totalorder %s239, %s240
    %p254 = scmp.eq.s32.totalorder %s23, 1
    %p255 = por %p253, %p254
    %p257 = scmp.ne.s32.totalorder %s240, %s256
    %p258 = scmp.eq.s32.totalorder %s23, 0
    %p259 = por %p257, %p258
    %s260 = ssub.s32 %s17, %s24
    %p261 = scmp.eq.s32.totalorder %s260, 0
    %s263 = sadd.s32 %s262, 1
    %s264 = scalar_select %p261, %s262, %s263
    %p267 = pneg %p261
    %p268 = scmp.eq.s32.totalorder %s17, 1
    %p269 = por %p267, %p268
    %p270 = scmp.ne.s32.totalorder %s262, %s265
    %p271 = scmp.eq.s32.totalorder %s17, 0
    %p272 = por %p270, %p271
    %p273 = scmp.ne.s32.totalorder %s262, %s265
    %p274 = scmp.eq.s32.totalorder %s22, 1
    %p275 = por %p273, %p274
    %p276 = scmp.ne.s32.totalorder %s265, %s266
    %p277 = scmp.eq.s32.totalorder %s22, 0
    %p278 = por %p276, %p277
    %p279 = scmp.ne.s32.totalorder %s265, %s266
    %p280 = scmp.eq.s32.totalorder %s23, 1
    %p281 = por %p279, %p280
    %p283 = scmp.ne.s32.totalorder %s266, %s282
    %p284 = scmp.eq.s32.totalorder %s23, 0
    %p285 = por %p283, %p284
    %p286 = scmp.le.s32.totalorder 1, %s17
    %p287 = scmp.lt.s32.totalorder %s17, 3
    %p288 = pnand %p286, %p287
    %p289 = pneg %p288
    // Predicated region
    $region9: #{roi_relation_head_forward.1} parent=5 // pred_check
      _
    $region10: #{roi_relation_head_forward.1} parent=5 // pred_check_branch
      %291 = sbr.rel (%p288) target = $region12
    $region11: #{roi_relation_head_forward.1} parent=5 // pred_region
      %s292 = ssub.s32 %s17, 1
      // Predicated region
      $region13: #{roi_relation_head_forward.1} parent=11 // pred_check
        %p293 = pneg %p116
      $region14: #{roi_relation_head_forward.1} parent=11 // pred_check_branch
        %295 = sbr.rel (%p293) target = $region16
      $region15: #{roi_relation_head_forward.1} parent=11 // pred_region
        _
      $region16: #{roi_relation_head_forward.1} parent=11 // pred_fallthru
        _
      // Predicated region
      $region17: #{roi_relation_head_forward.1} parent=11 // pred_check
        %p296 = pneg %p137
      $region18: #{roi_relation_head_forward.1} parent=11 // pred_check_branch
        %298 = sbr.rel (%p296) target = $region20
      $region19: #{roi_relation_head_forward.1} parent=11 // pred_region
        _
      $region20: #{roi_relation_head_forward.1} parent=11 // pred_fallthru
        _
      // Predicated region
      $region21: #{roi_relation_head_forward.1} parent=11 // pred_check
        %p299 = pneg %p158
      $region22: #{roi_relation_head_forward.1} parent=11 // pred_check_branch
        %301 = sbr.rel (%p299) target = $region24
      $region23: #{roi_relation_head_forward.1} parent=11 // pred_region
        _
      $region24: #{roi_relation_head_forward.1} parent=11 // pred_fallthru
        _
      // Predicated region
      $region25: #{roi_relation_head_forward.1} parent=11 // pred_check
        %p302 = pneg %p179
      $region26: #{roi_relation_head_forward.1} parent=11 // pred_check_branch
        %304 = sbr.rel (%p302) target = $region28
      $region27: #{roi_relation_head_forward.1} parent=11 // pred_region
        _
      $region28: #{roi_relation_head_forward.1} parent=11 // pred_fallthru
        _
      // Predicated region
      $region29: #{roi_relation_head_forward.1} parent=11 // pred_check
        %p305 = pneg %p200
      $region30: #{roi_relation_head_forward.1} parent=11 // pred_check_branch
        %307 = sbr.rel (%p305) target = $region32
      $region31: #{roi_relation_head_forward.1} parent=11 // pred_region
        _
      $region32: #{roi_relation_head_forward.1} parent=11 // pred_fallthru
        _
    $region12: #{roi_relation_head_forward.1} parent=5 // pred_fallthru
      _
    %p308 = scmp.lt.s32.totalorder %s17, 2
    // Predicated region
    $region33: #{roi_relation_head_forward.1} parent=5 // pred_check
      %p309 = pneg %p308
    $region34: #{roi_relation_head_forward.1} parent=5 // pred_check_branch
      %311 = sbr.rel (%p309) target = $region36
    $region35: #{roi_relation_head_forward.1} parent=5 // pred_region
      // Predicated region
      $region37: #{roi_relation_head_forward.1} parent=35 // pred_check
        %p312 = pneg %p37
      $region38: #{roi_relation_head_forward.1} parent=35 // pred_check_branch
        %314 = sbr.rel (%p312) target = $region40
      $region39: #{roi_relation_head_forward.1} parent=35 // pred_region
        %p315 = scmp.lt.s32.totalorder %s17, 1
        %s316 = scalar_select %p315, %s17, 1
        %s317 = smul.addr %s316, 32
        %s318 = smul.addr %s317, 4
        %s319 = scalar_lea.vmem %s0, %s318
      $region40: #{roi_relation_head_forward.1} parent=35 // pred_fallthru
        _
      // Predicated region
      $region41: #{roi_relation_head_forward.1} parent=35 // pred_check
        %p320 = pneg %p63
      $region42: #{roi_relation_head_forward.1} parent=35 // pred_check_branch
        %322 = sbr.rel (%p320) target = $region44
      $region43: #{roi_relation_head_forward.1} parent=35 // pred_region
        %p323 = scmp.lt.s32.totalorder %s17, 1
        %s324 = scalar_select %p323, %s17, 1
        %s325 = smul.addr %s324, 96
        %s326 = smul.addr %s325, 4
        %s327 = scalar_lea.vmem %s1, %s326
      $region44: #{roi_relation_head_forward.1} parent=35 // pred_fallthru
        _
      // Predicated region
      $region45: #{roi_relation_head_forward.1} parent=35 // pred_check
        %p328 = pneg %p89
      $region46: #{roi_relation_head_forward.1} parent=35 // pred_check_branch
        %330 = sbr.rel (%p328) target = $region48
      $region47: #{roi_relation_head_forward.1} parent=35 // pred_region
        %p331 = scmp.lt.s32.totalorder %s17, 1
        %s332 = scalar_select %p331, %s17, 1
        %s333 = smul.addr %s332, 2
        %s334 = smul.addr %s333, 4
        %s335 = scalar_lea.vmem %s2, %s334
      $region48: #{roi_relation_head_forward.1} parent=35 // pred_fallthru
        _
    $region36: #{roi_relation_head_forward.1} parent=5 // pred_fallthru
      _
    %p336 = scmp.le.s32.totalorder 1, %s17
    %p337 = scmp.lt.s32.totalorder %s17, 3
    %p338 = pnand %p336, %p337
    %p339 = pneg %p338
    // Predicated region
    $region49: #{roi_relation_head_forward.1} parent=5 // pred_check
      _
    $region50: #{roi_relation_head_forward.1} parent=5 // pred_check_branch
      %341 = sbr.rel (%p338) target = $region52
    $region51: #{roi_relation_head_forward.1} parent=5 // pred_region
      %s342 = ssub.s32 %s17, 1
      %p343 = scmp.lt.s32.totalorder %s22, 1
      %s344 = scalar_select %p343, %s22, 1
      %s345 = smul.addr %s344, 32
      %s346 = smul.addr %s345, 4
      %s347 = scalar_lea.vmem %s0, %s346
      %p348 = pneg %p43
      %p349 = pneg %p40
      %p350 = scmp.lt.s32.totalorder %s22, 1
      %s351 = scalar_select %p350, %s22, 1
      %s352 = smul.addr %s351, 96
      %s353 = smul.addr %s352, 4
      %s354 = scalar_lea.vmem %s1, %s353
      %p355 = pneg %p69
      %p356 = pneg %p66
      %p357 = scmp.lt.s32.totalorder %s22, 1
      %s358 = scalar_select %p357, %s22, 1
      %s359 = smul.addr %s358, 2
      %s360 = smul.addr %s359, 4
      %s361 = scalar_lea.vmem %s2, %s360
      %p362 = pneg %p95
      %p363 = pneg %p92
      %p364 = pneg %p116
      %p365 = pneg %p113
      %p366 = pneg %p137
      %p367 = pneg %p134
      %p368 = pneg %p158
      %p369 = pneg %p155
      %p370 = pneg %p179
      %p371 = pneg %p176
      %p372 = pneg %p200
      %p373 = pneg %p197
      %p374 = pneg %p226
      %p375 = pneg %p223
      %p376 = scmp.lt.s32.totalorder %s22, 1
      %s377 = scalar_select %p376, %s22, 1
      %s378 = smul.addr %s377, 8
      %s379 = scalar_lea.vmem %s8, %s378
      %p380 = pneg %p252
      %p381 = pneg %p249
      %p382 = scmp.lt.s32.totalorder %s22, 1
      %s383 = scalar_select %p382, %s22, 1
      %s384 = smul.addr %s383, 8
      %s385 = scalar_lea.vmem %s9, %s384
      %p386 = pneg %p278
      %p387 = pneg %p275
      %p388 = scmp.lt.s32.totalorder %s22, 1
      %s389 = scalar_select %p388, %s22, 1
      %s390 = smul.addr %s389, 2
      %s391 = smul.addr %s390, 8
      %s392 = scalar_lea.vmem %s10, %s391
      %p393 = scmp.lt.s32.totalorder %s22, 1
      %s394 = scalar_select %p393, %s22, 1
      %s395 = smul.addr %s394, 32
      %s396 = smul.addr %s395, 4
      %s397 = scalar_lea.vmem %s0, %s396
      %p398 = scmp.lt.s32.totalorder %s22, 1
      %s399 = scalar_select %p398, %s22, 1
      %s400 = smul.addr %s399, 96
      %s401 = smul.addr %s400, 4
      %s402 = scalar_lea.vmem %s1, %s401
      %p403 = scmp.lt.s32.totalorder %s22, 1
      %s404 = scalar_select %p403, %s22, 1
      %s405 = smul.addr %s404, 2
      %s406 = smul.addr %s405, 4
      %s407 = scalar_lea.vmem %s2, %s406
      %p408 = scmp.lt.s32.totalorder %s22, 1
      %s409 = scalar_select %p408, %s22, 1
      %s410 = smul.addr %s409, 8
      %s411 = scalar_lea.vmem %s8, %s410
      %p412 = scmp.lt.s32.totalorder %s22, 1
      %s413 = scalar_select %p412, %s22, 1
      %s414 = smul.addr %s413, 8
      %s415 = scalar_lea.vmem %s9, %s414
      %p416 = scmp.lt.s32.totalorder %s22, 1
      %s417 = scalar_select %p416, %s22, 1
      %s418 = smul.addr %s417, 2
      %s419 = smul.addr %s418, 8
      %s420 = scalar_lea.vmem %s10, %s419
      %v422 = vld [vmem:[%s397] sm:$0xf]
      %v423 = vld [vmem:[%s397 + $0x4] sm:$0xf]
      %v424 = vld [vmem:[%s397 + $0x8] sm:$0xf]
      %v425 = vld [vmem:[%s397 + $0xc] sm:$0xf]
      %v426 = vld [vmem:[%s397 + $0x10] sm:$0xf]
      %v427 = vld [vmem:[%s397 + $0x14] sm:$0xf]
      %v428 = vld [vmem:[%s397 + $0x18] sm:$0xf]
      %v429 = vld [vmem:[%s397 + $0x1c] sm:$0xf]
      %v430 = vld [vmem:[%s397 + $0x20] sm:$0xf]
      %v431 = vld [vmem:[%s397 + $0x24] sm:$0xf]
      %v432 = vld [vmem:[%s397 + $0x28] sm:$0xf]
      %v433 = vld [vmem:[%s397 + $0x2c] sm:$0xf]
      %v434 = vld [vmem:[%s397 + $0x30] sm:$0xf]
      %v435 = vld [vmem:[%s397 + $0x34] sm:$0xf]
      %v436 = vld [vmem:[%s397 + $0x38] sm:$0xf]
      %v437 = vld [vmem:[%s397 + $0x3c] sm:$0xf]
      %v438 = vld [vmem:[%s397 + $0x40] sm:$0xf]
      %v439 = vld [vmem:[%s397 + $0x44] sm:$0xf]
      %v440 = vld [vmem:[%s397 + $0x48] sm:$0xf]
      %v441 = vld [vmem:[%s397 + $0x4c] sm:$0xf]
      %v442 = vld [vmem:[%s397 + $0x50] sm:$0xf]
      %v443 = vld [vmem:[%s397 + $0x54] sm:$0xf]
      %v444 = vld [vmem:[%s397 + $0x58] sm:$0xf]
      %v445 = vld [vmem:[%s397 + $0x5c] sm:$0xf]
      %v446 = vld [vmem:[%s397 + $0x60] sm:$0xf]
      %v447 = vld [vmem:[%s397 + $0x64] sm:$0xf]
      %v448 = vld [vmem:[%s397 + $0x68] sm:$0xf]
      %v449 = vld [vmem:[%s397 + $0x6c] sm:$0xf]
      %v450 = vld [vmem:[%s397 + $0x70] sm:$0xf]
      %v451 = vld [vmem:[%s397 + $0x74] sm:$0xf]
      %v452 = vld [vmem:[%s397 + $0x78] sm:$0xf]
      %v453 = vld [vmem:[%s397 + $0x7c] sm:$0xf]
      %v454 = vld [vmem:[%s402] sm:$0xff]
      %v455 = vld [vmem:[%s402 + $0x8] sm:$0xff]
      %v456 = vld [vmem:[%s402 + $0x10] sm:$0xff]
      %v457 = vld [vmem:[%s402 + $0x18] sm:$0xff]
      %v458 = vld [vmem:[%s402 + $0x20] sm:$0xff]
      %v459 = vld [vmem:[%s402 + $0x28] sm:$0xff]
      %v460 = vld [vmem:[%s402 + $0x30] sm:$0xff]
      %v461 = vld [vmem:[%s402 + $0x38] sm:$0xff]
      %v462 = vld [vmem:[%s402 + $0x40] sm:$0xff]
      %v463 = vld [vmem:[%s402 + $0x48] sm:$0xff]
      %v464 = vld [vmem:[%s402 + $0x50] sm:$0xff]
      %v465 = vld [vmem:[%s402 + $0x58] sm:$0xff]
      %v466 = vld [vmem:[%s402 + $0x60] sm:$0xff]
      %v467 = vld [vmem:[%s402 + $0x68] sm:$0xff]
      %v468 = vld [vmem:[%s402 + $0x70] sm:$0xff]
      %v469 = vld [vmem:[%s402 + $0x78] sm:$0xff]
      %v470 = vld [vmem:[%s402 + $0x80] sm:$0xff]
      %v471 = vld [vmem:[%s402 + $0x88] sm:$0xff]
      %v472 = vld [vmem:[%s402 + $0x90] sm:$0xff]
      %v473 = vld [vmem:[%s402 + $0x98] sm:$0xff]
      %v474 = vld [vmem:[%s402 + $0xa0] sm:$0xff]
      %v475 = vld [vmem:[%s402 + $0xa8] sm:$0xff]
      %v476 = vld [vmem:[%s402 + $0xb0] sm:$0xff]
      %v477 = vld [vmem:[%s402 + $0xb8] sm:$0xff]
      %v478 = vld [vmem:[%s402 + $0xc0] sm:$0xff]
      %v479 = vld [vmem:[%s402 + $0xc8] sm:$0xff]
      %v480 = vld [vmem:[%s402 + $0xd0] sm:$0xff]
      %v481 = vld [vmem:[%s402 + $0xd8] sm:$0xff]
      %v482 = vld [vmem:[%s402 + $0xe0] sm:$0xff]
      %v483 = vld [vmem:[%s402 + $0xe8] sm:$0xff]
      %v484 = vld [vmem:[%s402 + $0xf0] sm:$0xff]
      %v485 = vld [vmem:[%s402 + $0xf8] sm:$0xff]
      %v486 = vld [vmem:[%s402 + $0x100] sm:$0xff]
      %v487 = vld [vmem:[%s402 + $0x108] sm:$0xff]
      %v488 = vld [vmem:[%s402 + $0x110] sm:$0xff]
      %v489 = vld [vmem:[%s402 + $0x118] sm:$0xff]
      %v490 = vld [vmem:[%s402 + $0x120] sm:$0xff]
      %v491 = vld [vmem:[%s402 + $0x128] sm:$0xff]
      %v492 = vld [vmem:[%s402 + $0x130] sm:$0xff]
      %v493 = vld [vmem:[%s402 + $0x138] sm:$0xff]
      %v494 = vld [vmem:[%s402 + $0x140] sm:$0xff]
      %v495 = vld [vmem:[%s402 + $0x148] sm:$0xff]
      %v496 = vld [vmem:[%s402 + $0x150] sm:$0xff]
      %v497 = vld [vmem:[%s402 + $0x158] sm:$0xff]
      %v498 = vld [vmem:[%s402 + $0x160] sm:$0xff]
      %v499 = vld [vmem:[%s402 + $0x168] sm:$0xff]
      %v500 = vld [vmem:[%s402 + $0x170] sm:$0xff]
      %v501 = vld [vmem:[%s402 + $0x178] sm:$0xff]
      %v550 = vunpack.c.l.b16 %v454
      %v551 = vunpack.c.h.b16 %v454
      %v552 = vunpack.c.l.b16 %v455
      %v553 = vunpack.c.h.b16 %v455
      %v554 = vunpack.c.l.b16 %v456
      %v555 = vunpack.c.h.b16 %v456
      %v556 = vunpack.c.l.b16 %v457
      %v557 = vunpack.c.h.b16 %v457
      %v558 = vunpack.c.l.b16 %v458
      %v559 = vunpack.c.h.b16 %v458
      %v560 = vunpack.c.l.b16 %v459
      %v561 = vunpack.c.h.b16 %v459
      %v562 = vunpack.c.l.b16 %v460
      %v563 = vunpack.c.h.b16 %v460
      %v564 = vunpack.c.l.b16 %v461
      %v565 = vunpack.c.h.b16 %v461
      %v566 = vunpack.c.l.b16 %v462
      %v567 = vunpack.c.h.b16 %v462
      %v568 = vunpack.c.l.b16 %v463
      %v569 = vunpack.c.h.b16 %v463
      %v570 = vunpack.c.l.b16 %v464
      %v571 = vunpack.c.h.b16 %v464
      %v572 = vunpack.c.l.b16 %v465
      %v573 = vunpack.c.h.b16 %v465
      %v574 = vunpack.c.l.b16 %v466
      %v575 = vunpack.c.h.b16 %v466
      %v576 = vunpack.c.l.b16 %v467
      %v577 = vunpack.c.h.b16 %v467
      %v578 = vunpack.c.l.b16 %v468
      %v579 = vunpack.c.h.b16 %v468
      %v580 = vunpack.c.l.b16 %v469
      %v581 = vunpack.c.h.b16 %v469
      %v582 = vunpack.c.l.b16 %v470
      %v583 = vunpack.c.h.b16 %v470
      %v584 = vunpack.c.l.b16 %v471
      %v585 = vunpack.c.h.b16 %v471
      %v586 = vunpack.c.l.b16 %v472
      %v587 = vunpack.c.h.b16 %v472
      %v588 = vunpack.c.l.b16 %v473
      %v589 = vunpack.c.h.b16 %v473
      %v590 = vunpack.c.l.b16 %v474
      %v591 = vunpack.c.h.b16 %v474
      %v592 = vunpack.c.l.b16 %v475
      %v593 = vunpack.c.h.b16 %v475
      %v594 = vunpack.c.l.b16 %v476
      %v595 = vunpack.c.h.b16 %v476
      %v596 = vunpack.c.l.b16 %v477
      %v597 = vunpack.c.h.b16 %v477
      %v598 = vunpack.c.l.b16 %v478
      %v599 = vunpack.c.h.b16 %v478
      %v600 = vunpack.c.l.b16 %v479
      %v601 = vunpack.c.h.b16 %v479
      %v602 = vunpack.c.l.b16 %v480
      %v603 = vunpack.c.h.b16 %v480
      %v604 = vunpack.c.l.b16 %v481
      %v605 = vunpack.c.h.b16 %v481
      %v606 = vunpack.c.l.b16 %v482
      %v607 = vunpack.c.h.b16 %v482
      %v608 = vunpack.c.l.b16 %v483
      %v609 = vunpack.c.h.b16 %v483
      %v610 = vunpack.c.l.b16 %v484
      %v611 = vunpack.c.h.b16 %v484
      %v612 = vunpack.c.l.b16 %v485
      %v613 = vunpack.c.h.b16 %v485
      %v614 = vunpack.c.l.b16 %v486
      %v615 = vunpack.c.h.b16 %v486
      %v616 = vunpack.c.l.b16 %v487
      %v617 = vunpack.c.h.b16 %v487
      %v618 = vunpack.c.l.b16 %v488
      %v619 = vunpack.c.h.b16 %v488
      %v620 = vunpack.c.l.b16 %v489
      %v621 = vunpack.c.h.b16 %v489
      %v622 = vunpack.c.l.b16 %v490
      %v623 = vunpack.c.h.b16 %v490
      %v624 = vunpack.c.l.b16 %v491
      %v625 = vunpack.c.h.b16 %v491
      %v626 = vunpack.c.l.b16 %v492
      %v627 = vunpack.c.h.b16 %v492
      %v628 = vunpack.c.l.b16 %v493
      %v629 = vunpack.c.h.b16 %v493
      %v630 = vunpack.c.l.b16 %v494
      %v631 = vunpack.c.h.b16 %v494
      %v632 = vunpack.c.l.b16 %v495
      %v633 = vunpack.c.h.b16 %v495
      %v634 = vunpack.c.l.b16 %v496
      %v635 = vunpack.c.h.b16 %v496
      %v636 = vunpack.c.l.b16 %v497
      %v637 = vunpack.c.h.b16 %v497
      %v638 = vunpack.c.l.b16 %v498
      %v639 = vunpack.c.h.b16 %v498
      %v640 = vunpack.c.l.b16 %v499
      %v641 = vunpack.c.h.b16 %v499
      %v642 = vunpack.c.l.b16 %v500
      %v643 = vunpack.c.h.b16 %v500
      %v644 = vunpack.c.l.b16 %v501
      %v645 = vunpack.c.h.b16 %v501
      %v646 = vpack.c.b16 %v552, %v550
      %v647 = vpack.c.b16 %v553, %v551
      %v648 = vpack.c.b16 %v556, %v554
      %v649 = vpack.c.b16 %v557, %v555
      %v650 = vpack.c.b16 %v560, %v558
      %v651 = vpack.c.b16 %v561, %v559
      %v652 = vpack.c.b16 %v564, %v562
      %v653 = vpack.c.b16 %v565, %v563
      %v654 = vpack.c.b16 %v568, %v566
      %v655 = vpack.c.b16 %v569, %v567
      %v656 = vpack.c.b16 %v572, %v570
      %v657 = vpack.c.b16 %v573, %v571
      %v658 = vpack.c.b16 %v576, %v574
      %v659 = vpack.c.b16 %v577, %v575
      %v660 = vpack.c.b16 %v580, %v578
      %v661 = vpack.c.b16 %v581, %v579
      %v662 = vpack.c.b16 %v584, %v582
      %v663 = vpack.c.b16 %v585, %v583
      %v664 = vpack.c.b16 %v588, %v586
      %v665 = vpack.c.b16 %v589, %v587
      %v666 = vpack.c.b16 %v592, %v590
      %v667 = vpack.c.b16 %v593, %v591
      %v668 = vpack.c.b16 %v596, %v594
      %v669 = vpack.c.b16 %v597, %v595
      %v670 = vpack.c.b16 %v600, %v598
      %v671 = vpack.c.b16 %v601, %v599
      %v672 = vpack.c.b16 %v604, %v602
      %v673 = vpack.c.b16 %v605, %v603
      %v674 = vpack.c.b16 %v608, %v606
      %v675 = vpack.c.b16 %v609, %v607
      %v676 = vpack.c.b16 %v612, %v610
      %v677 = vpack.c.b16 %v613, %v611
      %v678 = vpack.c.b16 %v616, %v614
      %v679 = vpack.c.b16 %v617, %v615
      %v680 = vpack.c.b16 %v620, %v618
      %v681 = vpack.c.b16 %v621, %v619
      %v682 = vpack.c.b16 %v624, %v622
      %v683 = vpack.c.b16 %v625, %v623
      %v684 = vpack.c.b16 %v628, %v626
      %v685 = vpack.c.b16 %v629, %v627
      %v686 = vpack.c.b16 %v632, %v630
      %v687 = vpack.c.b16 %v633, %v631
      %v688 = vpack.c.b16 %v636, %v634
      %v689 = vpack.c.b16 %v637, %v635
      %v690 = vpack.c.b16 %v640, %v638
      %v691 = vpack.c.b16 %v641, %v639
      %v692 = vpack.c.b16 %v644, %v642
      %v693 = vpack.c.b16 %v645, %v643
      %v774 = vunpack.c.l.b16 %v422
      %v775 = vunpack.c.l.b16 %v423
      %v776 = vunpack.c.l.b16 %v424
      %v777 = vunpack.c.l.b16 %v425
      %v778 = vunpack.c.l.b16 %v426
      %v779 = vunpack.c.l.b16 %v427
      %v780 = vunpack.c.l.b16 %v428
      %v781 = vunpack.c.l.b16 %v429
      %v782 = vunpack.c.l.b16 %v430
      %v783 = vunpack.c.l.b16 %v431
      %v784 = vunpack.c.l.b16 %v432
      %v785 = vunpack.c.l.b16 %v433
      %v786 = vunpack.c.l.b16 %v434
      %v787 = vunpack.c.l.b16 %v435
      %v788 = vunpack.c.l.b16 %v436
      %v789 = vunpack.c.l.b16 %v437
      %v790 = vunpack.c.l.b16 %v438
      %v791 = vunpack.c.l.b16 %v439
      %v792 = vunpack.c.l.b16 %v440
      %v793 = vunpack.c.l.b16 %v441
      %v794 = vunpack.c.l.b16 %v442
      %v795 = vunpack.c.l.b16 %v443
      %v796 = vunpack.c.l.b16 %v444
      %v797 = vunpack.c.l.b16 %v445
      %v798 = vunpack.c.l.b16 %v446
      %v799 = vunpack.c.l.b16 %v447
      %v800 = vunpack.c.l.b16 %v448
      %v801 = vunpack.c.l.b16 %v449
      %v802 = vunpack.c.l.b16 %v450
      %v803 = vunpack.c.l.b16 %v451
      %v804 = vunpack.c.l.b16 %v452
      %v805 = vunpack.c.l.b16 %v453
      %v806 = vpack.c.b16 %v775, %v774
      %v807 = vpack.c.b16 %v777, %v776
      %v808 = vpack.c.b16 %v779, %v778
      %v809 = vpack.c.b16 %v781, %v780
      %v810 = vpack.c.b16 %v783, %v782
      %v811 = vpack.c.b16 %v785, %v784
      %v812 = vpack.c.b16 %v787, %v786
      %v813 = vpack.c.b16 %v789, %v788
      %v814 = vpack.c.b16 %v791, %v790
      %v815 = vpack.c.b16 %v793, %v792
      %v816 = vpack.c.b16 %v795, %v794
      %v817 = vpack.c.b16 %v797, %v796
      %v818 = vpack.c.b16 %v799, %v798
      %v819 = vpack.c.b16 %v801, %v800
      %v820 = vpack.c.b16 %v803, %v802
      %v821 = vpack.c.b16 %v805, %v804
      %838 = vmatprep.subr.bf16.mxu0 0
      %839 = vmatpush1.bf16.msra.mxu0 %v806
      %840 = vmatprep.subr.bf16.mxu0 0
      %841 = vmatpush1.bf16.msra.mxu0 %v807
      %842 = vmatprep.subr.bf16.mxu0 0
      %843 = vmatpush1.bf16.msra.mxu0 %v808
      %844 = vmatprep.subr.bf16.mxu0 0
      %845 = vmatpush1.bf16.msra.mxu0 %v809
      %846 = vmatprep.subr.bf16.mxu0 0
      %847 = vmatpush1.bf16.msra.mxu0 %v810
      %848 = vmatprep.subr.bf16.mxu0 0
      %849 = vmatpush1.bf16.msra.mxu0 %v811
      %850 = vmatprep.subr.bf16.mxu0 0
      %851 = vmatpush1.bf16.msra.mxu0 %v812
      %852 = vmatprep.subr.bf16.mxu0 0
      %853 = vmatpush1.bf16.msra.mxu0 %v813
      %854 = vmatprep.subr.bf16.mxu0 0
      %855 = vmatpush1.bf16.msra.mxu0 %v814
      %856 = vmatprep.subr.bf16.mxu0 0
      %857 = vmatpush1.bf16.msra.mxu0 %v815
      %858 = vmatprep.subr.bf16.mxu0 0
      %859 = vmatpush1.bf16.msra.mxu0 %v816
      %860 = vmatprep.subr.bf16.mxu0 0
      %861 = vmatpush1.bf16.msra.mxu0 %v817
      %862 = vmatprep.subr.bf16.mxu0 0
      %863 = vmatpush1.bf16.msra.mxu0 %v818
      %864 = vmatprep.subr.bf16.mxu0 0
      %865 = vmatpush1.bf16.msra.mxu0 %v819
      %866 = vmatprep.subr.bf16.mxu0 0
      %867 = vmatpush1.bf16.msra.mxu0 %v820
      %868 = vmatprep.subr.bf16.mxu0 0
      %869 = vmatpush1.bf16.msra.mxu0 %v821
      %870 = vmatprep.mubr.bf16.mxu0 %v647
      %871 = vmatmul.mubr.bf16.gmra.mrb[0].mxu0 %v646
      %v872 = vpop.f32.mrb[0].mxu0
      %v873 = vadd.f32 0.0, %v872
      %v874 = vpop.f32.mrb[0].mxu0
      %v875 = vpop.f32.mrb[0].mxu0
      %v876 = vadd.f32 0.0, %v875
      %v877 = vpop.f32.mrb[0].mxu0
      %878 = vmatprep.mubr.bf16.mxu0 %v649
      %879 = vmatmul.mubr.bf16.gmra.mrb[0].mxu0 %v648
      %v880 = vpop.f32.mrb[0].mxu0
      %v881 = vadd.f32 0.0, %v880
      %v882 = vpop.f32.mrb[0].mxu0
      %v883 = vpop.f32.mrb[0].mxu0
      %v884 = vadd.f32 0.0, %v883
      %v885 = vpop.f32.mrb[0].mxu0
      %886 = vmatprep.mubr.bf16.mxu0 %v651
      %887 = vmatmul.mubr.bf16.gmra.mrb[0].mxu0 %v650
      %v888 = vpop.f32.mrb[0].mxu0
      %v889 = vadd.f32 0.0, %v888
      %v890 = vpop.f32.mrb[0].mxu0
      %v891 = vpop.f32.mrb[0].mxu0
      %v892 = vadd.f32 0.0, %v891
      %v893 = vpop.f32.mrb[0].mxu0
      %894 = vmatprep.mubr.bf16.mxu0 %v653
      %895 = vmatmul.mubr.bf16.gmra.mrb[0].mxu0 %v652
      %v896 = vpop.f32.mrb[0].mxu0
      %v897 = vadd.f32 0.0, %v896
      %v898 = vpop.f32.mrb[0].mxu0
      %v899 = vpop.f32.mrb[0].mxu0
      %v900 = vadd.f32 0.0, %v899
      %v901 = vpop.f32.mrb[0].mxu0
      %902 = vmatprep.mubr.bf16.mxu0 %v655
      %903 = vmatmul.mubr.bf16.gmra.mrb[0].mxu0 %v654
      %v904 = vpop.f32.mrb[0].mxu0
      %v905 = vadd.f32 0.0, %v904
      %v906 = vpop.f32.mrb[0].mxu0
      %v907 = vpop.f32.mrb[0].mxu0
      %v908 = vadd.f32 0.0, %v907
      %v909 = vpop.f32.mrb[0].mxu0
      %910 = vmatprep.mubr.bf16.mxu0 %v657
      %911 = vmatmul.mubr.bf16.gmra.mrb[0].mxu0 %v656
      %v912 = vpop.f32.mrb[0].mxu0
      %v913 = vadd.f32 0.0, %v912
      %v914 = vpop.f32.mrb[0].mxu0
      %v915 = vpop.f32.mrb[0].mxu0
      %v916 = vadd.f32 0.0, %v915
      %v917 = vpop.f32.mrb[0].mxu0
      %918 = vmatprep.mubr.bf16.mxu0 %v659
      %919 = vmatmul.mubr.bf16.gmra.mrb[0].mxu0 %v658
      %v920 = vpop.f32.mrb[0].mxu0
      %v921 = vadd.f32 0.0, %v920
      %v922 = vpop.f32.mrb[0].mxu0
      %v923 = vpop.f32.mrb[0].mxu0
      %v924 = vadd.f32 0.0, %v923
      %v925 = vpop.f32.mrb[0].mxu0
      %926 = vmatprep.mubr.bf16.mxu0 %v661
      %927 = vmatmul.mubr.bf16.gmra.mrb[0].mxu0 %v660
      %v928 = vpop.f32.mrb[0].mxu0
      %v929 = vadd.f32 0.0, %v928
      %v930 = vpop.f32.mrb[0].mxu0
      %v931 = vpop.f32.mrb[0].mxu0
      %v932 = vadd.f32 0.0, %v931
      %v933 = vpop.f32.mrb[0].mxu0
      %934 = vmatprep.mubr.bf16.mxu0 %v663
      %935 = vmatmul.mubr.bf16.gmra.mrb[0].mxu0 %v662
      %v936 = vpop.f32.mrb[0].mxu0
      %v937 = vadd.f32 0.0, %v936
      %v938 = vpop.f32.mrb[0].mxu0
      %v939 = vpop.f32.mrb[0].mxu0
      %v940 = vadd.f32 0.0, %v939
      %v941 = vpop.f32.mrb[0].mxu0
      %942 = vmatprep.mubr.bf16.mxu0 %v665
      %943 = vmatmul.mubr.bf16.gmra.mrb[0].mxu0 %v664
      %v944 = vpop.f32.mrb[0].mxu0
      %v945 = vadd.f32 0.0, %v944
      %v946 = vpop.f32.mrb[0].mxu0
      %v947 = vpop.f32.mrb[0].mxu0
      %v948 = vadd.f32 0.0, %v947
      %v949 = vpop.f32.mrb[0].mxu0
      %950 = vmatprep.mubr.bf16.mxu0 %v667
      %951 = vmatmul.mubr.bf16.gmra.mrb[0].mxu0 %v666
      %v952 = vpop.f32.mrb[0].mxu0
      %v953 = vadd.f32 0.0, %v952
      %v954 = vpop.f32.mrb[0].mxu0
      %v955 = vpop.f32.mrb[0].mxu0
      %v956 = vadd.f32 0.0, %v955
      %v957 = vpop.f32.mrb[0].mxu0
      %958 = vmatprep.mubr.bf16.mxu0 %v669
      %959 = vmatmul.mubr.bf16.gmra.mrb[0].mxu0 %v668
      %v960 = vpop.f32.mrb[0].mxu0
      %v961 = vadd.f32 0.0, %v960
      %v962 = vpop.f32.mrb[0].mxu0
      %v963 = vpop.f32.mrb[0].mxu0
      %v964 = vadd.f32 0.0, %v963
      %v965 = vpop.f32.mrb[0].mxu0
      %966 = vmatprep.mubr.bf16.mxu0 %v671
      %967 = vmatmul.mubr.bf16.gmra.mrb[0].mxu0 %v670
      %v968 = vpop.f32.mrb[0].mxu0
      %v969 = vadd.f32 0.0, %v968
      %v970 = vpop.f32.mrb[0].mxu0
      %v971 = vpop.f32.mrb[0].mxu0
      %v972 = vadd.f32 0.0, %v971
      %v973 = vpop.f32.mrb[0].mxu0
      %974 = vmatprep.mubr.bf16.mxu0 %v673
      %975 = vmatmul.mubr.bf16.gmra.mrb[0].mxu0 %v672
      %v976 = vpop.f32.mrb[0].mxu0
      %v977 = vadd.f32 0.0, %v976
      %v978 = vpop.f32.mrb[0].mxu0
      %v979 = vpop.f32.mrb[0].mxu0
      %v980 = vadd.f32 0.0, %v979
      %v981 = vpop.f32.mrb[0].mxu0
      %982 = vmatprep.mubr.bf16.mxu0 %v675
      %983 = vmatmul.mubr.bf16.gmra.mrb[0].mxu0 %v674
      %v984 = vpop.f32.mrb[0].mxu0
      %v985 = vadd.f32 0.0, %v984
      %v986 = vpop.f32.mrb[0].mxu0
      %v987 = vpop.f32.mrb[0].mxu0
      %v988 = vadd.f32 0.0, %v987
      %v989 = vpop.f32.mrb[0].mxu0
      %990 = vmatprep.mubr.bf16.mxu0 %v677
      %991 = vmatmul.mubr.bf16.gmra.mrb[0].mxu0 %v676
      %v992 = vpop.f32.mrb[0].mxu0
      %v993 = vadd.f32 0.0, %v992
      %v994 = vpop.f32.mrb[0].mxu0
      %v995 = vpop.f32.mrb[0].mxu0
      %v996 = vadd.f32 0.0, %v995
      %v997 = vpop.f32.mrb[0].mxu0
      %998 = vmatprep.mubr.bf16.mxu0 %v679
      %999 = vmatmul.mubr.bf16.gmra.mrb[0].mxu0 %v678
      %v1000 = vpop.f32.mrb[0].mxu0
      %v1001 = vadd.f32 0.0, %v1000
      %v1002 = vpop.f32.mrb[0].mxu0
      %v1003 = vpop.f32.mrb[0].mxu0
      %v1004 = vadd.f32 0.0, %v1003
      %v1005 = vpop.f32.mrb[0].mxu0
      %1006 = vmatprep.mubr.bf16.mxu0 %v681
      %1007 = vmatmul.mubr.bf16.gmra.mrb[0].mxu0 %v680
      %v1008 = vpop.f32.mrb[0].mxu0
      %v1009 = vadd.f32 0.0, %v1008
      %v1010 = vpop.f32.mrb[0].mxu0
      %v1011 = vpop.f32.mrb[0].mxu0
      %v1012 = vadd.f32 0.0, %v1011
      %v1013 = vpop.f32.mrb[0].mxu0
      %1014 = vmatprep.mubr.bf16.mxu0 %v683
      %1015 = vmatmul.mubr.bf16.gmra.mrb[0].mxu0 %v682
      %v1016 = vpop.f32.mrb[0].mxu0
      %v1017 = vadd.f32 0.0, %v1016
      %v1018 = vpop.f32.mrb[0].mxu0
      %v1019 = vpop.f32.mrb[0].mxu0
      %v1020 = vadd.f32 0.0, %v1019
      %v1021 = vpop.f32.mrb[0].mxu0
      %1022 = vmatprep.mubr.bf16.mxu0 %v685
      %1023 = vmatmul.mubr.bf16.gmra.mrb[0].mxu0 %v684
      %v1024 = vpop.f32.mrb[0].mxu0
      %v1025 = vadd.f32 0.0, %v1024
      %v1026 = vpop.f32.mrb[0].mxu0
      %v1027 = vpop.f32.mrb[0].mxu0
      %v1028 = vadd.f32 0.0, %v1027
      %v1029 = vpop.f32.mrb[0].mxu0
      %1030 = vmatprep.mubr.bf16.mxu0 %v687
      %1031 = vmatmul.mubr.bf16.gmra.mrb[0].mxu0 %v686
      %v1032 = vpop.f32.mrb[0].mxu0
      %v1033 = vadd.f32 0.0, %v1032
      %v1034 = vpop.f32.mrb[0].mxu0
      %v1035 = vpop.f32.mrb[0].mxu0
      %v1036 = vadd.f32 0.0, %v1035
      %v1037 = vpop.f32.mrb[0].mxu0
      %1038 = vmatprep.mubr.bf16.mxu0 %v689
      %1039 = vmatmul.mubr.bf16.gmra.mrb[0].mxu0 %v688
      %v1040 = vpop.f32.mrb[0].mxu0
      %v1041 = vadd.f32 0.0, %v1040
      %v1042 = vpop.f32.mrb[0].mxu0
      %v1043 = vpop.f32.mrb[0].mxu0
      %v1044 = vadd.f32 0.0, %v1043
      %v1045 = vpop.f32.mrb[0].mxu0
      %1046 = vmatprep.mubr.bf16.mxu0 %v691
      %1047 = vmatmul.mubr.bf16.gmra.mrb[0].mxu0 %v690
      %v1048 = vpop.f32.mrb[0].mxu0
      %v1049 = vadd.f32 0.0, %v1048
      %v1050 = vpop.f32.mrb[0].mxu0
      %v1051 = vpop.f32.mrb[0].mxu0
      %v1052 = vadd.f32 0.0, %v1051
      %v1053 = vpop.f32.mrb[0].mxu0
      %1054 = vmatprep.mubr.bf16.mxu0 %v693
      %1055 = vmatmul.mubr.bf16.gmra.mrb[0].mxu0 %v692
      %v1056 = vpop.f32.mrb[0].mxu0
      %v1057 = vadd.f32 0.0, %v1056
      %v1058 = vpop.f32.mrb[0].mxu0
      %v1059 = vpop.f32.mrb[0].mxu0
      %v1060 = vadd.f32 0.0, %v1059
      %v1061 = vpop.f32.mrb[0].mxu0
      %1062 = vdwg.mxu0
      %v1063 = vpack.c.bf16 %v876, %v873
      %v1064 = vpack.c.bf16 %v881, %v881
      %v1065 = vpack.c.bf16 %v889, %v884
      %v1066 = vpack.c.bf16 %v892, %v892
      %v1067 = vpack.c.bf16 %v900, %v897
      %v1068 = vpack.c.bf16 %v905, %v905
      %v1069 = vpack.c.bf16 %v913, %v908
      %v1070 = vpack.c.bf16 %v916, %v916
      %v1071 = vpack.c.bf16 %v924, %v921
      %v1072 = vpack.c.bf16 %v929, %v929
      %v1073 = vpack.c.bf16 %v937, %v932
      %v1074 = vpack.c.bf16 %v940, %v940
      %v1075 = vpack.c.bf16 %v948, %v945
      %v1076 = vpack.c.bf16 %v953, %v953
      %v1077 = vpack.c.bf16 %v961, %v956
      %v1078 = vpack.c.bf16 %v964, %v964
      %v1079 = vpack.c.bf16 %v972, %v969
      %v1080 = vpack.c.bf16 %v977, %v977
      %v1081 = vpack.c.bf16 %v985, %v980
      %v1082 = vpack.c.bf16 %v988, %v988
      %v1083 = vpack.c.bf16 %v996, %v993
      %v1084 = vpack.c.bf16 %v1001, %v1001
      %v1085 = vpack.c.bf16 %v1009, %v1004
      %v1086 = vpack.c.bf16 %v1012, %v1012
      %v1087 = vpack.c.bf16 %v1020, %v1017
      %v1088 = vpack.c.bf16 %v1025, %v1025
      %v1089 = vpack.c.bf16 %v1033, %v1028
      %v1090 = vpack.c.bf16 %v1036, %v1036
      %v1091 = vpack.c.bf16 %v1044, %v1041
      %v1092 = vpack.c.bf16 %v1049, %v1049
      %v1093 = vpack.c.bf16 %v1057, %v1052
      %v1094 = vpack.c.bf16 %v1060, %v1060
      %v1095 = vld [vmem:[%s3] sm:$0xff]
      %v1096 = vld [vmem:[%s3 + $0x8] sm:$0xff]
      %v1097 = vld [vmem:[%s3 + $0x10] sm:$0xff]
      %v1098 = vld [vmem:[%s3 + $0x18] sm:$0xff]
      %v1099 = vld [vmem:[%s3 + $0x20] sm:$0xff]
      %v1100 = vld [vmem:[%s3 + $0x28] sm:$0xff]
      %v1101 = vld [vmem:[%s3 + $0x30] sm:$0xff]
      %v1102 = vld [vmem:[%s3 + $0x38] sm:$0xff]
      %v1103 = vld [vmem:[%s3 + $0x40] sm:$0xff]
      %v1104 = vld [vmem:[%s3 + $0x48] sm:$0xff]
      %v1105 = vld [vmem:[%s3 + $0x50] sm:$0xff]
      %v1106 = vld [vmem:[%s3 + $0x58] sm:$0xff]
      %v1107 = vld [vmem:[%s3 + $0x60] sm:$0xff]
      %v1108 = vld [vmem:[%s3 + $0x68] sm:$0xff]
      %v1109 = vld [vmem:[%s3 + $0x70] sm:$0xff]
      %v1110 = vld [vmem:[%s3 + $0x78] sm:$0xff]
      %v1111 = vld [vmem:[%s3 + $0x80] sm:$0xff]
      %v1112 = vld [vmem:[%s3 + $0x88] sm:$0xff]
      %v1113 = vld [vmem:[%s3 + $0x90] sm:$0xff]
      %v1114 = vld [vmem:[%s3 + $0x98] sm:$0xff]
      %v1115 = vld [vmem:[%s3 + $0xa0] sm:$0xff]
      %v1116 = vld [vmem:[%s3 + $0xa8] sm:$0xff]
      %v1117 = vld [vmem:[%s3 + $0xb0] sm:$0xff]
      %v1118 = vld [vmem:[%s3 + $0xb8] sm:$0xff]
      %v1119 = vld [vmem:[%s3 + $0xc0] sm:$0xff]
      %v1120 = vld [vmem:[%s3 + $0xc8] sm:$0xff]
      %v1121 = vld [vmem:[%s3 + $0xd0] sm:$0xff]
      %v1122 = vld [vmem:[%s3 + $0xd8] sm:$0xff]
      %v1123 = vld [vmem:[%s3 + $0xe0] sm:$0xff]
      %v1124 = vld [vmem:[%s3 + $0xe8] sm:$0xff]
      %v1125 = vld [vmem:[%s3 + $0xf0] sm:$0xff]
      %v1126 = vld [vmem:[%s3 + $0xf8] sm:$0xff]
      %v1129 = vunpack.c.l.b16 %v1095
      %v1130 = vunpack.c.h.b16 %v1095
      %v1131 = vunpack.c.l.b16 %v1096
      %v1132 = vunpack.c.h.b16 %v1096
      %v1133 = vpack.c.b16 %v1131, %v1129
      %v1134 = vpack.c.b16 %v1132, %v1130
      %vm1137 = vcmask 130048
      %v1139 = vsel %vm1137, %v1063, 0
      %v1142 = vsel %vm1137, %v1064, 0
      %1144 = vmatprep.subr.bf16.mxu0 %v1134
      %1145 = vmatpush1.bf16.msra.mxu0 %v1133
      %1146 = vmatprep.subr.bf16.mxu0 0
      %1147 = vmatpush1.bf16.msra.mxu0 0
      %1148 = vmatprep.subr.bf16.mxu0 0
      %1149 = vmatpush1.bf16.msra.mxu0 0
      %1150 = vmatprep.subr.bf16.mxu0 0
      %1151 = vmatpush1.bf16.msra.mxu0 0
      %1152 = vmatprep.subr.bf16.mxu0 0
      %1153 = vmatpush1.bf16.msra.mxu0 0
      %1154 = vmatprep.subr.bf16.mxu0 0
      %1155 = vmatpush1.bf16.msra.mxu0 0
      %1156 = vmatprep.subr.bf16.mxu0 0
      %1157 = vmatpush1.bf16.msra.mxu0 0
      %1158 = vmatprep.subr.bf16.mxu0 0
      %1159 = vmatpush1.bf16.msra.mxu0 0
      %1160 = vmatprep.subr.bf16.mxu0 0
      %1161 = vmatpush1.bf16.msra.mxu0 0
      %1162 = vmatprep.subr.bf16.mxu0 0
      %1163 = vmatpush1.bf16.msra.mxu0 0
      %1164 = vmatprep.subr.bf16.mxu0 0
      %1165 = vmatpush1.bf16.msra.mxu0 0
      %1166 = vmatprep.subr.bf16.mxu0 0
      %1167 = vmatpush1.bf16.msra.mxu0 0
      %1168 = vmatprep.subr.bf16.mxu0 0
      %1169 = vmatpush1.bf16.msra.mxu0 0
      %1170 = vmatprep.subr.bf16.mxu0 0
      %1171 = vmatpush1.bf16.msra.mxu0 0
      %1172 = vmatprep.subr.bf16.mxu0 0
      %1173 = vmatpush1.bf16.msra.mxu0 0
      %1174 = vmatprep.subr.bf16.mxu0 0
      %1175 = vmatpush1.bf16.msra.mxu0 0
      %1176 = vmatprep.mubr.bf16.mxu0 0
      %1177 = vmatmul.mubr.bf16.gmra.mrb[0].mxu0 %v1139
      %v1178 = vpop.f32.mrb[0].mxu0
      %v1179 = vadd.f32 0.0, %v1178
      %v1180 = vpop.f32.mrb[0].mxu0
      %v1181 = vpop.f32.mrb[0].mxu0
      %v1182 = vpop.f32.mrb[0].mxu0
      %v1183 = vadd.f32 0.0, %v1182
      %1184 = vmatprep.mubr.bf16.mxu0 0
      %1185 = vmatmul.mubr.bf16.gmra.mrb[0].mxu0 %v1142
      %v1186 = vpop.f32.mrb[0].mxu0
      %v1187 = vpop.f32.mrb[0].mxu0
      %v1188 = vadd.f32 0.0, %v1187
      %v1189 = vpop.f32.mrb[0].mxu0
      %v1190 = vpop.f32.mrb[0].mxu0
      %1191 = vdwg.mxu0
      %v1194 = vunpack.c.l.b16 %v1097
      %v1195 = vunpack.c.h.b16 %v1097
      %v1196 = vunpack.c.l.b16 %v1098
      %v1197 = vunpack.c.h.b16 %v1098
      %v1198 = vpack.c.b16 %v1196, %v1194
      %v1199 = vpack.c.b16 %v1197, %v1195
      %v1203 = vsel %vm1137, %v1065, 0
      %v1206 = vsel %vm1137, %v1066, 0
      %1208 = vmatprep.subr.bf16.mxu0 %v1199
      %1209 = vmatpush1.bf16.msra.mxu0 %v1198
      %1210 = vmatprep.subr.bf16.mxu0 0
      %1211 = vmatpush1.bf16.msra.mxu0 0
      %1212 = vmatprep.subr.bf16.mxu0 0
      %1213 = vmatpush1.bf16.msra.mxu0 0
      %1214 = vmatprep.subr.bf16.mxu0 0
      %1215 = vmatpush1.bf16.msra.mxu0 0
      %1216 = vmatprep.subr.bf16.mxu0 0
      %1217 = vmatpush1.bf16.msra.mxu0 0
      %1218 = vmatprep.subr.bf16.mxu0 0
      %1219 = vmatpush1.bf16.msra.mxu0 0
      %1220 = vmatprep.subr.bf16.mxu0 0
      %1221 = vmatpush1.bf16.msra.mxu0 0
      %1222 = vmatprep.subr.bf16.mxu0 0
      %1223 = vmatpush1.bf16.msra.mxu0 0
      %1224 = vmatprep.subr.bf16.mxu0 0
      %1225 = vmatpush1.bf16.msra.mxu0 0
      %1226 = vmatprep.subr.bf16.mxu0 0
      %1227 = vmatpush1.bf16.msra.mxu0 0
      %1228 = vmatprep.subr.bf16.mxu0 0
      %1229 = vmatpush1.bf16.msra.mxu0 0
      %1230 = vmatprep.subr.bf16.mxu0 0
      %1231 = vmatpush1.bf16.msra.mxu0 0
      %1232 = vmatprep.subr.bf16.mxu0 0
      %1233 = vmatpush1.bf16.msra.mxu0 0
      %1234 = vmatprep.subr.bf16.mxu0 0
      %1235 = vmatpush1.bf16.msra.mxu0 0
      %1236 = vmatprep.subr.bf16.mxu0 0
      %1237 = vmatpush1.bf16.msra.mxu0 0
      %1238 = vmatprep.subr.bf16.mxu0 0
      %1239 = vmatpush1.bf16.msra.mxu0 0
      %1240 = vmatprep.mubr.bf16.mxu0 0
      %1241 = vmatmul.mubr.bf16.gmra.mrb[0].mxu0 %v1203
      %v1242 = vpop.f32.mrb[0].mxu0
      %v1243 = vadd.f32 0.0, %v1242
      %v1244 = vpop.f32.mrb[0].mxu0
      %v1245 = vpop.f32.mrb[0].mxu0
      %v1246 = vpop.f32.mrb[0].mxu0
      %v1247 = vadd.f32 0.0, %v1246
      %1248 = vmatprep.mubr.bf16.mxu0 0
      %1249 = vmatmul.mubr.bf16.gmra.mrb[0].mxu0 %v1206
      %v1250 = vpop.f32.mrb[0].mxu0
      %v1251 = vpop.f32.mrb[0].mxu0
      %v1252 = vadd.f32 0.0, %v1251
      %v1253 = vpop.f32.mrb[0].mxu0
      %v1254 = vpop.f32.mrb[0].mxu0
      %1255 = vdwg.mxu0
      %v1258 = vunpack.c.l.b16 %v1099
      %v1259 = vunpack.c.h.b16 %v1099
      %v1260 = vunpack.c.l.b16 %v1100
      %v1261 = vunpack.c.h.b16 %v1100
      %v1262 = vpack.c.b16 %v1260, %v1258
      %v1263 = vpack.c.b16 %v1261, %v1259
      %v1267 = vsel %vm1137, %v1067, 0
      %v1270 = vsel %vm1137, %v1068, 0
      %1272 = vmatprep.subr.bf16.mxu0 %v1263
      %1273 = vmatpush1.bf16.msra.mxu0 %v1262
      %1274 = vmatprep.subr.bf16.mxu0 0
      %1275 = vmatpush1.bf16.msra.mxu0 0
      %1276 = vmatprep.subr.bf16.mxu0 0
      %1277 = vmatpush1.bf16.msra.mxu0 0
      %1278 = vmatprep.subr.bf16.mxu0 0
      %1279 = vmatpush1.bf16.msra.mxu0 0
      %1280 = vmatprep.subr.bf16.mxu0 0
      %1281 = vmatpush1.bf16.msra.mxu0 0
      %1282 = vmatprep.subr.bf16.mxu0 0
      %1283 = vmatpush1.bf16.msra.mxu0 0
      %1284 = vmatprep.subr.bf16.mxu0 0
      %1285 = vmatpush1.bf16.msra.mxu0 0
      %1286 = vmatprep.subr.bf16.mxu0 0
      %1287 = vmatpush1.bf16.msra.mxu0 0
      %1288 = vmatprep.subr.bf16.mxu0 0
      %1289 = vmatpush1.bf16.msra.mxu0 0
      %1290 = vmatprep.subr.bf16.mxu0 0
      %1291 = vmatpush1.bf16.msra.mxu0 0
      %1292 = vmatprep.subr.bf16.mxu0 0
      %1293 = vmatpush1.bf16.msra.mxu0 0
      %1294 = vmatprep.subr.bf16.mxu0 0
      %1295 = vmatpush1.bf16.msra.mxu0 0
      %1296 = vmatprep.subr.bf16.mxu0 0
      %1297 = vmatpush1.bf16.msra.mxu0 0
      %1298 = vmatprep.subr.bf16.mxu0 0
      %1299 = vmatpush1.bf16.msra.mxu0 0
      %1300 = vmatprep.subr.bf16.mxu0 0
      %1301 = vmatpush1.bf16.msra.mxu0 0
      %1302 = vmatprep.subr.bf16.mxu0 0
      %1303 = vmatpush1.bf16.msra.mxu0 0
      %1304 = vmatprep.mubr.bf16.mxu0 0
      %1305 = vmatmul.mubr.bf16.gmra.mrb[0].mxu0 %v1267
      %v1306 = vpop.f32.mrb[0].mxu0
      %v1307 = vadd.f32 0.0, %v1306
      %v1308 = vpop.f32.mrb[0].mxu0
      %v1309 = vpop.f32.mrb[0].mxu0
      %v1310 = vpop.f32.mrb[0].mxu0
      %v1311 = vadd.f32 0.0, %v1310
      %1312 = vmatprep.mubr.bf16.mxu0 0
      %1313 = vmatmul.mubr.bf16.gmra.mrb[0].mxu0 %v1270
      %v1314 = vpop.f32.mrb[0].mxu0
      %v1315 = vpop.f32.mrb[0].mxu0
      %v1316 = vadd.f32 0.0, %v1315
      %v1317 = vpop.f32.mrb[0].mxu0
      %v1318 = vpop.f32.mrb[0].mxu0
      %1319 = vdwg.mxu0
      %v1322 = vunpack.c.l.b16 %v1101
      %v1323 = vunpack.c.h.b16 %v1101
      %v1324 = vunpack.c.l.b16 %v1102
      %v1325 = vunpack.c.h.b16 %v1102
      %v1326 = vpack.c.b16 %v1324, %v1322
      %v1327 = vpack.c.b16 %v1325, %v1323
      %v1331 = vsel %vm1137, %v1069, 0
      %v1334 = vsel %vm1137, %v1070, 0
      %1336 = vmatprep.subr.bf16.mxu0 %v1327
      %1337 = vmatpush1.bf16.msra.mxu0 %v1326
      %1338 = vmatprep.subr.bf16.mxu0 0
      %1339 = vmatpush1.bf16.msra.mxu0 0
      %1340 = vmatprep.subr.bf16.mxu0 0
      %1341 = vmatpush1.bf16.msra.mxu0 0
      %1342 = vmatprep.subr.bf16.mxu0 0
      %1343 = vmatpush1.bf16.msra.mxu0 0
      %1344 = vmatprep.subr.bf16.mxu0 0
      %1345 = vmatpush1.bf16.msra.mxu0 0
      %1346 = vmatprep.subr.bf16.mxu0 0
      %1347 = vmatpush1.bf16.msra.mxu0 0
      %1348 = vmatprep.subr.bf16.mxu0 0
      %1349 = vmatpush1.bf16.msra.mxu0 0
      %1350 = vmatprep.subr.bf16.mxu0 0
      %1351 = vmatpush1.bf16.msra.mxu0 0
      %1352 = vmatprep.subr.bf16.mxu0 0
      %1353 = vmatpush1.bf16.msra.mxu0 0
      %1354 = vmatprep.subr.bf16.mxu0 0
      %1355 = vmatpush1.bf16.msra.mxu0 0
      %1356 = vmatprep.subr.bf16.mxu0 0
      %1357 = vmatpush1.bf16.msra.mxu0 0
      %1358 = vmatprep.subr.bf16.mxu0 0
      %1359 = vmatpush1.bf16.msra.mxu0 0
      %1360 = vmatprep.subr.bf16.mxu0 0
      %1361 = vmatpush1.bf16.msra.mxu0 0
      %1362 = vmatprep.subr.bf16.mxu0 0
      %1363 = vmatpush1.bf16.msra.mxu0 0
      %1364 = vmatprep.subr.bf16.mxu0 0
      %1365 = vmatpush1.bf16.msra.mxu0 0
      %1366 = vmatprep.subr.bf16.mxu0 0
      %1367 = vmatpush1.bf16.msra.mxu0 0
      %1368 = vmatprep.mubr.bf16.mxu0 0
      %1369 = vmatmul.mubr.bf16.gmra.mrb[0].mxu0 %v1331
      %v1370 = vpop.f32.mrb[0].mxu0
      %v1371 = vadd.f32 0.0, %v1370
      %v1372 = vpop.f32.mrb[0].mxu0
      %v1373 = vpop.f32.mrb[0].mxu0
      %v1374 = vpop.f32.mrb[0].mxu0
      %v1375 = vadd.f32 0.0, %v1374
      %1376 = vmatprep.mubr.bf16.mxu0 0
      %1377 = vmatmul.mubr.bf16.gmra.mrb[0].mxu0 %v1334
      %v1378 = vpop.f32.mrb[0].mxu0
      %v1379 = vpop.f32.mrb[0].mxu0
      %v1380 = vadd.f32 0.0, %v1379
      %v1381 = vpop.f32.mrb[0].mxu0
      %v1382 = vpop.f32.mrb[0].mxu0
      %1383 = vdwg.mxu0
      %v1386 = vunpack.c.l.b16 %v1103
      %v1387 = vunpack.c.h.b16 %v1103
      %v1388 = vunpack.c.l.b16 %v1104
      %v1389 = vunpack.c.h.b16 %v1104
      %v1390 = vpack.c.b16 %v1388, %v1386
      %v1391 = vpack.c.b16 %v1389, %v1387
      %v1395 = vsel %vm1137, %v1071, 0
      %v1398 = vsel %vm1137, %v1072, 0
      %1400 = vmatprep.subr.bf16.mxu0 %v1391
      %1401 = vmatpush1.bf16.msra.mxu0 %v1390
      %1402 = vmatprep.subr.bf16.mxu0 0
      %1403 = vmatpush1.bf16.msra.mxu0 0
      %1404 = vmatprep.subr.bf16.mxu0 0
      %1405 = vmatpush1.bf16.msra.mxu0 0
      %1406 = vmatprep.subr.bf16.mxu0 0
      %1407 = vmatpush1.bf16.msra.mxu0 0
      %1408 = vmatprep.subr.bf16.mxu0 0
      %1409 = vmatpush1.bf16.msra.mxu0 0
      %1410 = vmatprep.subr.bf16.mxu0 0
      %1411 = vmatpush1.bf16.msra.mxu0 0
      %1412 = vmatprep.subr.bf16.mxu0 0
      %1413 = vmatpush1.bf16.msra.mxu0 0
      %1414 = vmatprep.subr.bf16.mxu0 0
      %1415 = vmatpush1.bf16.msra.mxu0 0
      %1416 = vmatprep.subr.bf16.mxu0 0
      %1417 = vmatpush1.bf16.msra.mxu0 0
      %1418 = vmatprep.subr.bf16.mxu0 0
      %1419 = vmatpush1.bf16.msra.mxu0 0
      %1420 = vmatprep.subr.bf16.mxu0 0
      %1421 = vmatpush1.bf16.msra.mxu0 0
      %1422 = vmatprep.subr.bf16.mxu0 0
      %1423 = vmatpush1.bf16.msra.mxu0 0
      %1424 = vmatprep.subr.bf16.mxu0 0
      %1425 = vmatpush1.bf16.msra.mxu0 0
      %1426 = vmatprep.subr.bf16.mxu0 0
      %1427 = vmatpush1.bf16.msra.mxu0 0
      %1428 = vmatprep.subr.bf16.mxu0 0
      %1429 = vmatpush1.bf16.msra.mxu0 0
      %1430 = vmatprep.subr.bf16.mxu0 0
      %1431 = vmatpush1.bf16.msra.mxu0 0
      %1432 = vmatprep.mubr.bf16.mxu0 0
      %1433 = vmatmul.mubr.bf16.gmra.mrb[0].mxu0 %v1395
      %v1434 = vpop.f32.mrb[0].mxu0
      %v1435 = vadd.f32 0.0, %v1434
      %v1436 = vpop.f32.mrb[0].mxu0
      %v1437 = vpop.f32.mrb[0].mxu0
      %v1438 = vpop.f32.mrb[0].mxu0
      %v1439 = vadd.f32 0.0, %v1438
      %1440 = vmatprep.mubr.bf16.mxu0 0
      %1441 = vmatmul.mubr.bf16.gmra.mrb[0].mxu0 %v1398
      %v1442 = vpop.f32.mrb[0].mxu0
      %v1443 = vpop.f32.mrb[0].mxu0
      %v1444 = vadd.f32 0.0, %v1443
      %v1445 = vpop.f32.mrb[0].mxu0
      %v1446 = vpop.f32.mrb[0].mxu0
      %1447 = vdwg.mxu0
      %v1450 = vunpack.c.l.b16 %v1105
      %v1451 = vunpack.c.h.b16 %v1105
      %v1452 = vunpack.c.l.b16 %v1106
      %v1453 = vunpack.c.h.b16 %v1106
      %v1454 = vpack.c.b16 %v1452, %v1450
      %v1455 = vpack.c.b16 %v1453, %v1451
      %v1459 = vsel %vm1137, %v1073, 0
      %v1462 = vsel %vm1137, %v1074, 0
      %1464 = vmatprep.subr.bf16.mxu0 %v1455
      %1465 = vmatpush1.bf16.msra.mxu0 %v1454
      %1466 = vmatprep.subr.bf16.mxu0 0
      %1467 = vmatpush1.bf16.msra.mxu0 0
      %1468 = vmatprep.subr.bf16.mxu0 0
      %1469 = vmatpush1.bf16.msra.mxu0 0
      %1470 = vmatprep.subr.bf16.mxu0 0
      %1471 = vmatpush1.bf16.msra.mxu0 0
      %1472 = vmatprep.subr.bf16.mxu0 0
      %1473 = vmatpush1.bf16.msra.mxu0 0
      %1474 = vmatprep.subr.bf16.mxu0 0
      %1475 = vmatpush1.bf16.msra.mxu0 0
      %1476 = vmatprep.subr.bf16.mxu0 0
      %1477 = vmatpush1.bf16.msra.mxu0 0
      %1478 = vmatprep.subr.bf16.mxu0 0
      %1479 = vmatpush1.bf16.msra.mxu0 0
      %1480 = vmatprep.subr.bf16.mxu0 0
      %1481 = vmatpush1.bf16.msra.mxu0 0
      %1482 = vmatprep.subr.bf16.mxu0 0
      %1483 = vmatpush1.bf16.msra.mxu0 0
      %1484 = vmatprep.subr.bf16.mxu0 0
      %1485 = vmatpush1.bf16.msra.mxu0 0
      %1486 = vmatprep.subr.bf16.mxu0 0
      %1487 = vmatpush1.bf16.msra.mxu0 0
      %1488 = vmatprep.subr.bf16.mxu0 0
      %1489 = vmatpush1.bf16.msra.mxu0 0
      %1490 = vmatprep.subr.bf16.mxu0 0
      %1491 = vmatpush1.bf16.msra.mxu0 0
      %1492 = vmatprep.subr.bf16.mxu0 0
      %1493 = vmatpush1.bf16.msra.mxu0 0
      %1494 = vmatprep.subr.bf16.mxu0 0
      %1495 = vmatpush1.bf16.msra.mxu0 0
      %1496 = vmatprep.mubr.bf16.mxu0 0
      %1497 = vmatmul.mubr.bf16.gmra.mrb[0].mxu0 %v1459
      %v1498 = vpop.f32.mrb[0].mxu0
      %v1499 = vadd.f32 0.0, %v1498
      %v1500 = vpop.f32.mrb[0].mxu0
      %v1501 = vpop.f32.mrb[0].mxu0
      %v1502 = vpop.f32.mrb[0].mxu0
      %v1503 = vadd.f32 0.0, %v1502
      %1504 = vmatprep.mubr.bf16.mxu0 0
      %1505 = vmatmul.mubr.bf16.gmra.mrb[0].mxu0 %v1462
      %v1506 = vpop.f32.mrb[0].mxu0
      %v1507 = vpop.f32.mrb[0].mxu0
      %v1508 = vadd.f32 0.0, %v1507
      %v1509 = vpop.f32.mrb[0].mxu0
      %v1510 = vpop.f32.mrb[0].mxu0
      %1511 = vdwg.mxu0
      %v1514 = vunpack.c.l.b16 %v1107
      %v1515 = vunpack.c.h.b16 %v1107
      %v1516 = vunpack.c.l.b16 %v1108
      %v1517 = vunpack.c.h.b16 %v1108
      %v1518 = vpack.c.b16 %v1516, %v1514
      %v1519 = vpack.c.b16 %v1517, %v1515
      %v1523 = vsel %vm1137, %v1075, 0
      %v1526 = vsel %vm1137, %v1076, 0
      %1528 = vmatprep.subr.bf16.mxu0 %v1519
      %1529 = vmatpush1.bf16.msra.mxu0 %v1518
      %1530 = vmatprep.subr.bf16.mxu0 0
      %1531 = vmatpush1.bf16.msra.mxu0 0
      %1532 = vmatprep.subr.bf16.mxu0 0
      %1533 = vmatpush1.bf16.msra.mxu0 0
      %1534 = vmatprep.subr.bf16.mxu0 0
      %1535 = vmatpush1.bf16.msra.mxu0 0
      %1536 = vmatprep.subr.bf16.mxu0 0
      %1537 = vmatpush1.bf16.msra.mxu0 0
      %1538 = vmatprep.subr.bf16.mxu0 0
      %1539 = vmatpush1.bf16.msra.mxu0 0
      %1540 = vmatprep.subr.bf16.mxu0 0
      %1541 = vmatpush1.bf16.msra.mxu0 0
      %1542 = vmatprep.subr.bf16.mxu0 0
      %1543 = vmatpush1.bf16.msra.mxu0 0
      %1544 = vmatprep.subr.bf16.mxu0 0
      %1545 = vmatpush1.bf16.msra.mxu0 0
      %1546 = vmatprep.subr.bf16.mxu0 0
      %1547 = vmatpush1.bf16.msra.mxu0 0
      %1548 = vmatprep.subr.bf16.mxu0 0
      %1549 = vmatpush1.bf16.msra.mxu0 0
      %1550 = vmatprep.subr.bf16.mxu0 0
      %1551 = vmatpush1.bf16.msra.mxu0 0
      %1552 = vmatprep.subr.bf16.mxu0 0
      %1553 = vmatpush1.bf16.msra.mxu0 0
      %1554 = vmatprep.subr.bf16.mxu0 0
      %1555 = vmatpush1.bf16.msra.mxu0 0
      %1556 = vmatprep.subr.bf16.mxu0 0
      %1557 = vmatpush1.bf16.msra.mxu0 0
      %1558 = vmatprep.subr.bf16.mxu0 0
      %1559 = vmatpush1.bf16.msra.mxu0 0
      %1560 = vmatprep.mubr.bf16.mxu0 0
      %1561 = vmatmul.mubr.bf16.gmra.mrb[0].mxu0 %v1523
      %v1562 = vpop.f32.mrb[0].mxu0
      %v1563 = vadd.f32 0.0, %v1562
      %v1564 = vpop.f32.mrb[0].mxu0
      %v1565 = vpop.f32.mrb[0].mxu0
      %v1566 = vpop.f32.mrb[0].mxu0
      %v1567 = vadd.f32 0.0, %v1566
      %1568 = vmatprep.mubr.bf16.mxu0 0
      %1569 = vmatmul.mubr.bf16.gmra.mrb[0].mxu0 %v1526
      %v1570 = vpop.f32.mrb[0].mxu0
      %v1571 = vpop.f32.mrb[0].mxu0
      %v1572 = vadd.f32 0.0, %v1571
      %v1573 = vpop.f32.mrb[0].mxu0
      %v1574 = vpop.f32.mrb[0].mxu0
      %1575 = vdwg.mxu0
      %v1578 = vunpack.c.l.b16 %v1109
      %v1579 = vunpack.c.h.b16 %v1109
      %v1580 = vunpack.c.l.b16 %v1110
      %v1581 = vunpack.c.h.b16 %v1110
      %v1582 = vpack.c.b16 %v1580, %v1578
      %v1583 = vpack.c.b16 %v1581, %v1579
      %v1587 = vsel %vm1137, %v1077, 0
      %v1590 = vsel %vm1137, %v1078, 0
      %1592 = vmatprep.subr.bf16.mxu0 %v1583
      %1593 = vmatpush1.bf16.msra.mxu0 %v1582
      %1594 = vmatprep.subr.bf16.mxu0 0
      %1595 = vmatpush1.bf16.msra.mxu0 0
      %1596 = vmatprep.subr.bf16.mxu0 0
      %1597 = vmatpush1.bf16.msra.mxu0 0
      %1598 = vmatprep.subr.bf16.mxu0 0
      %1599 = vmatpush1.bf16.msra.mxu0 0
      %1600 = vmatprep.subr.bf16.mxu0 0
      %1601 = vmatpush1.bf16.msra.mxu0 0
      %1602 = vmatprep.subr.bf16.mxu0 0
      %1603 = vmatpush1.bf16.msra.mxu0 0
      %1604 = vmatprep.subr.bf16.mxu0 0
      %1605 = vmatpush1.bf16.msra.mxu0 0
      %1606 = vmatprep.subr.bf16.mxu0 0
      %1607 = vmatpush1.bf16.msra.mxu0 0
      %1608 = vmatprep.subr.bf16.mxu0 0
      %1609 = vmatpush1.bf16.msra.mxu0 0
      %1610 = vmatprep.subr.bf16.mxu0 0
      %1611 = vmatpush1.bf16.msra.mxu0 0
      %1612 = vmatprep.subr.bf16.mxu0 0
      %1613 = vmatpush1.bf16.msra.mxu0 0
      %1614 = vmatprep.subr.bf16.mxu0 0
      %1615 = vmatpush1.bf16.msra.mxu0 0
      %1616 = vmatprep.subr.bf16.mxu0 0
      %1617 = vmatpush1.bf16.msra.mxu0 0
      %1618 = vmatprep.subr.bf16.mxu0 0
      %1619 = vmatpush1.bf16.msra.mxu0 0
      %1620 = vmatprep.subr.bf16.mxu0 0
      %1621 = vmatpush1.bf16.msra.mxu0 0
      %1622 = vmatprep.subr.bf16.mxu0 0
      %1623 = vmatpush1.bf16.msra.mxu0 0
      %1624 = vmatprep.mubr.bf16.mxu0 0
      %1625 = vmatmul.mubr.bf16.gmra.mrb[0].mxu0 %v1587
      %v1626 = vpop.f32.mrb[0].mxu0
      %v1627 = vadd.f32 0.0, %v1626
      %v1628 = vpop.f32.mrb[0].mxu0
      %v1629 = vpop.f32.mrb[0].mxu0
      %v1630 = vpop.f32.mrb[0].mxu0
      %v1631 = vadd.f32 0.0, %v1630
      %1632 = vmatprep.mubr.bf16.mxu0 0
      %1633 = vmatmul.mubr.bf16.gmra.mrb[0].mxu0 %v1590
      %v1634 = vpop.f32.mrb[0].mxu0
      %v1635 = vpop.f32.mrb[0].mxu0
      %v1636 = vadd.f32 0.0, %v1635
      %v1637 = vpop.f32.mrb[0].mxu0
      %v1638 = vpop.f32.mrb[0].mxu0
      %1639 = vdwg.mxu0
      %v1642 = vunpack.c.l.b16 %v1111
      %v1643 = vunpack.c.h.b16 %v1111
      %v1644 = vunpack.c.l.b16 %v1112
      %v1645 = vunpack.c.h.b16 %v1112
      %v1646 = vpack.c.b16 %v1644, %v1642
      %v1647 = vpack.c.b16 %v1645, %v1643
      %v1651 = vsel %vm1137, %v1079, 0
      %v1654 = vsel %vm1137, %v1080, 0
      %1656 = vmatprep.subr.bf16.mxu0 %v1647
      %1657 = vmatpush1.bf16.msra.mxu0 %v1646
      %1658 = vmatprep.subr.bf16.mxu0 0
      %1659 = vmatpush1.bf16.msra.mxu0 0
      %1660 = vmatprep.subr.bf16.mxu0 0
      %1661 = vmatpush1.bf16.msra.mxu0 0
      %1662 = vmatprep.subr.bf16.mxu0 0
      %1663 = vmatpush1.bf16.msra.mxu0 0
      %1664 = vmatprep.subr.bf16.mxu0 0
      %1665 = vmatpush1.bf16.msra.mxu0 0
      %1666 = vmatprep.subr.bf16.mxu0 0
      %1667 = vmatpush1.bf16.msra.mxu0 0
      %1668 = vmatprep.subr.bf16.mxu0 0
      %1669 = vmatpush1.bf16.msra.mxu0 0
      %1670 = vmatprep.subr.bf16.mxu0 0
      %1671 = vmatpush1.bf16.msra.mxu0 0
      %1672 = vmatprep.subr.bf16.mxu0 0
      %1673 = vmatpush1.bf16.msra.mxu0 0
      %1674 = vmatprep.subr.bf16.mxu0 0
      %1675 = vmatpush1.bf16.msra.mxu0 0
      %1676 = vmatprep.subr.bf16.mxu0 0
      %1677 = vmatpush1.bf16.msra.mxu0 0
      %1678 = vmatprep.subr.bf16.mxu0 0
      %1679 = vmatpush1.bf16.msra.mxu0 0
      %1680 = vmatprep.subr.bf16.mxu0 0
      %1681 = vmatpush1.bf16.msra.mxu0 0
      %1682 = vmatprep.subr.bf16.mxu0 0
      %1683 = vmatpush1.bf16.msra.mxu0 0
      %1684 = vmatprep.subr.bf16.mxu0 0
      %1685 = vmatpush1.bf16.msra.mxu0 0
      %1686 = vmatprep.subr.bf16.mxu0 0
      %1687 = vmatpush1.bf16.msra.mxu0 0
      %1688 = vmatprep.mubr.bf16.mxu0 0
      %1689 = vmatmul.mubr.bf16.gmra.mrb[0].mxu0 %v1651
      %v1690 = vpop.f32.mrb[0].mxu0
      %v1691 = vadd.f32 0.0, %v1690
      %v1692 = vpop.f32.mrb[0].mxu0
      %v1693 = vpop.f32.mrb[0].mxu0
      %v1694 = vpop.f32.mrb[0].mxu0
      %v1695 = vadd.f32 0.0, %v1694
      %1696 = vmatprep.mubr.bf16.mxu0 0
      %1697 = vmatmul.mubr.bf16.gmra.mrb[0].mxu0 %v1654
      %v1698 = vpop.f32.mrb[0].mxu0
      %v1699 = vpop.f32.mrb[0].mxu0
      %v1700 = vadd.f32 0.0, %v1699
      %v1701 = vpop.f32.mrb[0].mxu0
      %v1702 = vpop.f32.mrb[0].mxu0
      %1703 = vdwg.mxu0
      %v1706 = vunpack.c.l.b16 %v1113
      %v1707 = vunpack.c.h.b16 %v1113
      %v1708 = vunpack.c.l.b16 %v1114
      %v1709 = vunpack.c.h.b16 %v1114
      %v1710 = vpack.c.b16 %v1708, %v1706
      %v1711 = vpack.c.b16 %v1709, %v1707
      %v1715 = vsel %vm1137, %v1081, 0
      %v1718 = vsel %vm1137, %v1082, 0
      %1720 = vmatprep.subr.bf16.mxu0 %v1711
      %1721 = vmatpush1.bf16.msra.mxu0 %v1710
      %1722 = vmatprep.subr.bf16.mxu0 0
      %1723 = vmatpush1.bf16.msra.mxu0 0
      %1724 = vmatprep.subr.bf16.mxu0 0
      %1725 = vmatpush1.bf16.msra.mxu0 0
      %1726 = vmatprep.subr.bf16.mxu0 0
      %1727 = vmatpush1.bf16.msra.mxu0 0
      %1728 = vmatprep.subr.bf16.mxu0 0
      %1729 = vmatpush1.bf16.msra.mxu0 0
      %1730 = vmatprep.subr.bf16.mxu0 0
      %1731 = vmatpush1.bf16.msra.mxu0 0
      %1732 = vmatprep.subr.bf16.mxu0 0
      %1733 = vmatpush1.bf16.msra.mxu0 0
      %1734 = vmatprep.subr.bf16.mxu0 0
      %1735 = vmatpush1.bf16.msra.mxu0 0
      %1736 = vmatprep.subr.bf16.mxu0 0
      %1737 = vmatpush1.bf16.msra.mxu0 0
      %1738 = vmatprep.subr.bf16.mxu0 0
      %1739 = vmatpush1.bf16.msra.mxu0 0
      %1740 = vmatprep.subr.bf16.mxu0 0
      %1741 = vmatpush1.bf16.msra.mxu0 0
      %1742 = vmatprep.subr.bf16.mxu0 0
      %1743 = vmatpush1.bf16.msra.mxu0 0
      %1744 = vmatprep.subr.bf16.mxu0 0
      %1745 = vmatpush1.bf16.msra.mxu0 0
      %1746 = vmatprep.subr.bf16.mxu0 0
      %1747 = vmatpush1.bf16.msra.mxu0 0
      %1748 = vmatprep.subr.bf16.mxu0 0
      %1749 = vmatpush1.bf16.msra.mxu0 0
      %1750 = vmatprep.subr.bf16.mxu0 0
      %1751 = vmatpush1.bf16.msra.mxu0 0
      %1752 = vmatprep.mubr.bf16.mxu0 0
      %1753 = vmatmul.mubr.bf16.gmra.mrb[0].mxu0 %v1715
      %v1754 = vpop.f32.mrb[0].mxu0
      %v1755 = vadd.f32 0.0, %v1754
      %v1756 = vpop.f32.mrb[0].mxu0
      %v1757 = vpop.f32.mrb[0].mxu0
      %v1758 = vpop.f32.mrb[0].mxu0
      %v1759 = vadd.f32 0.0, %v1758
      %1760 = vmatprep.mubr.bf16.mxu0 0
      %1761 = vmatmul.mubr.bf16.gmra.mrb[0].mxu0 %v1718
      %v1762 = vpop.f32.mrb[0].mxu0
      %v1763 = vpop.f32.mrb[0].mxu0
      %v1764 = vadd.f32 0.0, %v1763
      %v1765 = vpop.f32.mrb[0].mxu0
      %v1766 = vpop.f32.mrb[0].mxu0
      %1767 = vdwg.mxu0
      %v1770 = vunpack.c.l.b16 %v1115
      %v1771 = vunpack.c.h.b16 %v1115
      %v1772 = vunpack.c.l.b16 %v1116
      %v1773 = vunpack.c.h.b16 %v1116
      %v1774 = vpack.c.b16 %v1772, %v1770
      %v1775 = vpack.c.b16 %v1773, %v1771
      %v1779 = vsel %vm1137, %v1083, 0
      %v1782 = vsel %vm1137, %v1084, 0
      %1784 = vmatprep.subr.bf16.mxu0 %v1775
      %1785 = vmatpush1.bf16.msra.mxu0 %v1774
      %1786 = vmatprep.subr.bf16.mxu0 0
      %1787 = vmatpush1.bf16.msra.mxu0 0
      %1788 = vmatprep.subr.bf16.mxu0 0
      %1789 = vmatpush1.bf16.msra.mxu0 0
      %1790 = vmatprep.subr.bf16.mxu0 0
      %1791 = vmatpush1.bf16.msra.mxu0 0
      %1792 = vmatprep.subr.bf16.mxu0 0
      %1793 = vmatpush1.bf16.msra.mxu0 0
      %1794 = vmatprep.subr.bf16.mxu0 0
      %1795 = vmatpush1.bf16.msra.mxu0 0
      %1796 = vmatprep.subr.bf16.mxu0 0
      %1797 = vmatpush1.bf16.msra.mxu0 0
      %1798 = vmatprep.subr.bf16.mxu0 0
      %1799 = vmatpush1.bf16.msra.mxu0 0
      %1800 = vmatprep.subr.bf16.mxu0 0
      %1801 = vmatpush1.bf16.msra.mxu0 0
      %1802 = vmatprep.subr.bf16.mxu0 0
      %1803 = vmatpush1.bf16.msra.mxu0 0
      %1804 = vmatprep.subr.bf16.mxu0 0
      %1805 = vmatpush1.bf16.msra.mxu0 0
      %1806 = vmatprep.subr.bf16.mxu0 0
      %1807 = vmatpush1.bf16.msra.mxu0 0
      %1808 = vmatprep.subr.bf16.mxu0 0
      %1809 = vmatpush1.bf16.msra.mxu0 0
      %1810 = vmatprep.subr.bf16.mxu0 0
      %1811 = vmatpush1.bf16.msra.mxu0 0
      %1812 = vmatprep.subr.bf16.mxu0 0
      %1813 = vmatpush1.bf16.msra.mxu0 0
      %1814 = vmatprep.subr.bf16.mxu0 0
      %1815 = vmatpush1.bf16.msra.mxu0 0
      %1816 = vmatprep.mubr.bf16.mxu0 0
      %1817 = vmatmul.mubr.bf16.gmra.mrb[0].mxu0 %v1779
      %v1818 = vpop.f32.mrb[0].mxu0
      %v1819 = vadd.f32 0.0, %v1818
      %v1820 = vpop.f32.mrb[0].mxu0
      %v1821 = vpop.f32.mrb[0].mxu0
      %v1822 = vpop.f32.mrb[0].mxu0
      %v1823 = vadd.f32 0.0, %v1822
      %1824 = vmatprep.mubr.bf16.mxu0 0
      %1825 = vmatmul.mubr.bf16.gmra.mrb[0].mxu0 %v1782
      %v1826 = vpop.f32.mrb[0].mxu0
      %v1827 = vpop.f32.mrb[0].mxu0
      %v1828 = vadd.f32 0.0, %v1827
      %v1829 = vpop.f32.mrb[0].mxu0
      %v1830 = vpop.f32.mrb[0].mxu0
      %1831 = vdwg.mxu0
      %v1834 = vunpack.c.l.b16 %v1117
      %v1835 = vunpack.c.h.b16 %v1117
      %v1836 = vunpack.c.l.b16 %v1118
      %v1837 = vunpack.c.h.b16 %v1118
      %v1838 = vpack.c.b16 %v1836, %v1834
      %v1839 = vpack.c.b16 %v1837, %v1835
      %v1843 = vsel %vm1137, %v1085, 0
      %v1846 = vsel %vm1137, %v1086, 0
      %1848 = vmatprep.subr.bf16.mxu0 %v1839
      %1849 = vmatpush1.bf16.msra.mxu0 %v1838
      %1850 = vmatprep.subr.bf16.mxu0 0
      %1851 = vmatpush1.bf16.msra.mxu0 0
      %1852 = vmatprep.subr.bf16.mxu0 0
      %1853 = vmatpush1.bf16.msra.mxu0 0
      %1854 = vmatprep.subr.bf16.mxu0 0
      %1855 = vmatpush1.bf16.msra.mxu0 0
      %1856 = vmatprep.subr.bf16.mxu0 0
      %1857 = vmatpush1.bf16.msra.mxu0 0
      %1858 = vmatprep.subr.bf16.mxu0 0
      %1859 = vmatpush1.bf16.msra.mxu0 0
      %1860 = vmatprep.subr.bf16.mxu0 0
      %1861 = vmatpush1.bf16.msra.mxu0 0
      %1862 = vmatprep.subr.bf16.mxu0 0
      %1863 = vmatpush1.bf16.msra.mxu0 0
      %1864 = vmatprep.subr.bf16.mxu0 0
      %1865 = vmatpush1.bf16.msra.mxu0 0
      %1866 = vmatprep.subr.bf16.mxu0 0
      %1867 = vmatpush1.bf16.msra.mxu0 0
      %1868 = vmatprep.subr.bf16.mxu0 0
      %1869 = vmatpush1.bf16.msra.mxu0 0
      %1870 = vmatprep.subr.bf16.mxu0 0
      %1871 = vmatpush1.bf16.msra.mxu0 0
      %1872 = vmatprep.subr.bf16.mxu0 0
      %1873 = vmatpush1.bf16.msra.mxu0 0
      %1874 = vmatprep.subr.bf16.mxu0 0
      %1875 = vmatpush1.bf16.msra.mxu0 0
      %1876 = vmatprep.subr.bf16.mxu0 0
      %1877 = vmatpush1.bf16.msra.mxu0 0
      %1878 = vmatprep.subr.bf16.mxu0 0
      %1879 = vmatpush1.bf16.msra.mxu0 0
      %1880 = vmatprep.mubr.bf16.mxu0 0
      %1881 = vmatmul.mubr.bf16.gmra.mrb[0].mxu0 %v1843
      %v1882 = vpop.f32.mrb[0].mxu0
      %v1883 = vadd.f32 0.0, %v1882
      %v1884 = vpop.f32.mrb[0].mxu0
      %v1885 = vpop.f32.mrb[0].mxu0
      %v1886 = vpop.f32.mrb[0].mxu0
      %v1887 = vadd.f32 0.0, %v1886
      %1888 = vmatprep.mubr.bf16.mxu0 0
      %1889 = vmatmul.mubr.bf16.gmra.mrb[0].mxu0 %v1846
      %v1890 = vpop.f32.mrb[0].mxu0
      %v1891 = vpop.f32.mrb[0].mxu0
      %v1892 = vadd.f32 0.0, %v1891
      %v1893 = vpop.f32.mrb[0].mxu0
      %v1894 = vpop.f32.mrb[0].mxu0
      %1895 = vdwg.mxu0
      %v1898 = vunpack.c.l.b16 %v1119
      %v1899 = vunpack.c.h.b16 %v1119
      %v1900 = vunpack.c.l.b16 %v1120
      %v1901 = vunpack.c.h.b16 %v1120
      %v1902 = vpack.c.b16 %v1900, %v1898
      %v1903 = vpack.c.b16 %v1901, %v1899
      %v1907 = vsel %vm1137, %v1087, 0
      %v1910 = vsel %vm1137, %v1088, 0
      %1912 = vmatprep.subr.bf16.mxu0 %v1903
      %1913 = vmatpush1.bf16.msra.mxu0 %v1902
      %1914 = vmatprep.subr.bf16.mxu0 0
      %1915 = vmatpush1.bf16.msra.mxu0 0
      %1916 = vmatprep.subr.bf16.mxu0 0
      %1917 = vmatpush1.bf16.msra.mxu0 0
      %1918 = vmatprep.subr.bf16.mxu0 0
      %1919 = vmatpush1.bf16.msra.mxu0 0
      %1920 = vmatprep.subr.bf16.mxu0 0
      %1921 = vmatpush1.bf16.msra.mxu0 0
      %1922 = vmatprep.subr.bf16.mxu0 0
      %1923 = vmatpush1.bf16.msra.mxu0 0
      %1924 = vmatprep.subr.bf16.mxu0 0
      %1925 = vmatpush1.bf16.msra.mxu0 0
      %1926 = vmatprep.subr.bf16.mxu0 0
      %1927 = vmatpush1.bf16.msra.mxu0 0
      %1928 = vmatprep.subr.bf16.mxu0 0
      %1929 = vmatpush1.bf16.msra.mxu0 0
      %1930 = vmatprep.subr.bf16.mxu0 0
      %1931 = vmatpush1.bf16.msra.mxu0 0
      %1932 = vmatprep.subr.bf16.mxu0 0
      %1933 = vmatpush1.bf16.msra.mxu0 0
      %1934 = vmatprep.subr.bf16.mxu0 0
      %1935 = vmatpush1.bf16.msra.mxu0 0
      %1936 = vmatprep.subr.bf16.mxu0 0
      %1937 = vmatpush1.bf16.msra.mxu0 0
      %1938 = vmatprep.subr.bf16.mxu0 0
      %1939 = vmatpush1.bf16.msra.mxu0 0
      %1940 = vmatprep.subr.bf16.mxu0 0
      %1941 = vmatpush1.bf16.msra.mxu0 0
      %1942 = vmatprep.subr.bf16.mxu0 0
      %1943 = vmatpush1.bf16.msra.mxu0 0
      %1944 = vmatprep.mubr.bf16.mxu0 0
      %1945 = vmatmul.mubr.bf16.gmra.mrb[0].mxu0 %v1907
      %v1946 = vpop.f32.mrb[0].mxu0
      %v1947 = vadd.f32 0.0, %v1946
      %v1948 = vpop.f32.mrb[0].mxu0
      %v1949 = vpop.f32.mrb[0].mxu0
      %v1950 = vpop.f32.mrb[0].mxu0
      %v1951 = vadd.f32 0.0, %v1950
      %1952 = vmatprep.mubr.bf16.mxu0 0
      %1953 = vmatmul.mubr.bf16.gmra.mrb[0].mxu0 %v1910
      %v1954 = vpop.f32.mrb[0].mxu0
      %v1955 = vpop.f32.mrb[0].mxu0
      %v1956 = vadd.f32 0.0, %v1955
      %v1957 = vpop.f32.mrb[0].mxu0
      %v1958 = vpop.f32.mrb[0].mxu0
      %1959 = vdwg.mxu0
      %v1962 = vunpack.c.l.b16 %v1121
      %v1963 = vunpack.c.h.b16 %v1121
      %v1964 = vunpack.c.l.b16 %v1122
      %v1965 = vunpack.c.h.b16 %v1122
      %v1966 = vpack.c.b16 %v1964, %v1962
      %v1967 = vpack.c.b16 %v1965, %v1963
      %v1971 = vsel %vm1137, %v1089, 0
      %v1974 = vsel %vm1137, %v1090, 0
      %1976 = vmatprep.subr.bf16.mxu0 %v1967
      %1977 = vmatpush1.bf16.msra.mxu0 %v1966
      %1978 = vmatprep.subr.bf16.mxu0 0
      %1979 = vmatpush1.bf16.msra.mxu0 0
      %1980 = vmatprep.subr.bf16.mxu0 0
      %1981 = vmatpush1.bf16.msra.mxu0 0
      %1982 = vmatprep.subr.bf16.mxu0 0
      %1983 = vmatpush1.bf16.msra.mxu0 0
      %1984 = vmatprep.subr.bf16.mxu0 0
      %1985 = vmatpush1.bf16.msra.mxu0 0
      %1986 = vmatprep.subr.bf16.mxu0 0
      %1987 = vmatpush1.bf16.msra.mxu0 0
      %1988 = vmatprep.subr.bf16.mxu0 0
      %1989 = vmatpush1.bf16.msra.mxu0 0
      %1990 = vmatprep.subr.bf16.mxu0 0
      %1991 = vmatpush1.bf16.msra.mxu0 0
      %1992 = vmatprep.subr.bf16.mxu0 0
      %1993 = vmatpush1.bf16.msra.mxu0 0
      %1994 = vmatprep.subr.bf16.mxu0 0
      %1995 = vmatpush1.bf16.msra.mxu0 0
      %1996 = vmatprep.subr.bf16.mxu0 0
      %1997 = vmatpush1.bf16.msra.mxu0 0
      %1998 = vmatprep.subr.bf16.mxu0 0
      %1999 = vmatpush1.bf16.msra.mxu0 0
      %2000 = vmatprep.subr.bf16.mxu0 0
      %2001 = vmatpush1.bf16.msra.mxu0 0
      %2002 = vmatprep.subr.bf16.mxu0 0
      %2003 = vmatpush1.bf16.msra.mxu0 0
      %2004 = vmatprep.subr.bf16.mxu0 0
      %2005 = vmatpush1.bf16.msra.mxu0 0
      %2006 = vmatprep.subr.bf16.mxu0 0
      %2007 = vmatpush1.bf16.msra.mxu0 0
      %2008 = vmatprep.mubr.bf16.mxu0 0
      %2009 = vmatmul.mubr.bf16.gmra.mrb[0].mxu0 %v1971
      %v2010 = vpop.f32.mrb[0].mxu0
      %v2011 = vadd.f32 0.0, %v2010
      %v2012 = vpop.f32.mrb[0].mxu0
      %v2013 = vpop.f32.mrb[0].mxu0
      %v2014 = vpop.f32.mrb[0].mxu0
      %v2015 = vadd.f32 0.0, %v2014
      %2016 = vmatprep.mubr.bf16.mxu0 0
      %2017 = vmatmul.mubr.bf16.gmra.mrb[0].mxu0 %v1974
      %v2018 = vpop.f32.mrb[0].mxu0
      %v2019 = vpop.f32.mrb[0].mxu0
      %v2020 = vadd.f32 0.0, %v2019
      %v2021 = vpop.f32.mrb[0].mxu0
      %v2022 = vpop.f32.mrb[0].mxu0
      %2023 = vdwg.mxu0
      %v2026 = vunpack.c.l.b16 %v1123
      %v2027 = vunpack.c.h.b16 %v1123
      %v2028 = vunpack.c.l.b16 %v1124
      %v2029 = vunpack.c.h.b16 %v1124
      %v2030 = vpack.c.b16 %v2028, %v2026
      %v2031 = vpack.c.b16 %v2029, %v2027
      %v2035 = vsel %vm1137, %v1091, 0
      %v2038 = vsel %vm1137, %v1092, 0
      %2040 = vmatprep.subr.bf16.mxu0 %v2031
      %2041 = vmatpush1.bf16.msra.mxu0 %v2030
      %2042 = vmatprep.subr.bf16.mxu0 0
      %2043 = vmatpush1.bf16.msra.mxu0 0
      %2044 = vmatprep.subr.bf16.mxu0 0
      %2045 = vmatpush1.bf16.msra.mxu0 0
      %2046 = vmatprep.subr.bf16.mxu0 0
      %2047 = vmatpush1.bf16.msra.mxu0 0
      %2048 = vmatprep.subr.bf16.mxu0 0
      %2049 = vmatpush1.bf16.msra.mxu0 0
      %2050 = vmatprep.subr.bf16.mxu0 0
      %2051 = vmatpush1.bf16.msra.mxu0 0
      %2052 = vmatprep.subr.bf16.mxu0 0
      %2053 = vmatpush1.bf16.msra.mxu0 0
      %2054 = vmatprep.subr.bf16.mxu0 0
      %2055 = vmatpush1.bf16.msra.mxu0 0
      %2056 = vmatprep.subr.bf16.mxu0 0
      %2057 = vmatpush1.bf16.msra.mxu0 0
      %2058 = vmatprep.subr.bf16.mxu0 0
      %2059 = vmatpush1.bf16.msra.mxu0 0
      %2060 = vmatprep.subr.bf16.mxu0 0
      %2061 = vmatpush1.bf16.msra.mxu0 0
      %2062 = vmatprep.subr.bf16.mxu0 0
      %2063 = vmatpush1.bf16.msra.mxu0 0
      %2064 = vmatprep.subr.bf16.mxu0 0
      %2065 = vmatpush1.bf16.msra.mxu0 0
      %2066 = vmatprep.subr.bf16.mxu0 0
      %2067 = vmatpush1.bf16.msra.mxu0 0
      %2068 = vmatprep.subr.bf16.mxu0 0
      %2069 = vmatpush1.bf16.msra.mxu0 0
      %2070 = vmatprep.subr.bf16.mxu0 0
      %2071 = vmatpush1.bf16.msra.mxu0 0
      %2072 = vmatprep.mubr.bf16.mxu0 0
      %2073 = vmatmul.mubr.bf16.gmra.mrb[0].mxu0 %v2035
      %v2074 = vpop.f32.mrb[0].mxu0
      %v2075 = vadd.f32 0.0, %v2074
      %v2076 = vpop.f32.mrb[0].mxu0
      %v2077 = vpop.f32.mrb[0].mxu0
      %v2078 = vpop.f32.mrb[0].mxu0
      %v2079 = vadd.f32 0.0, %v2078
      %2080 = vmatprep.mubr.bf16.mxu0 0
      %2081 = vmatmul.mubr.bf16.gmra.mrb[0].mxu0 %v2038
      %v2082 = vpop.f32.mrb[0].mxu0
      %v2083 = vpop.f32.mrb[0].mxu0
      %v2084 = vadd.f32 0.0, %v2083
      %v2085 = vpop.f32.mrb[0].mxu0
      %v2086 = vpop.f32.mrb[0].mxu0
      %2087 = vdwg.mxu0
      %v2090 = vunpack.c.l.b16 %v1125
      %v2091 = vunpack.c.h.b16 %v1125
      %v2092 = vunpack.c.l.b16 %v1126
      %v2093 = vunpack.c.h.b16 %v1126
      %v2094 = vpack.c.b16 %v2092, %v2090
      %v2095 = vpack.c.b16 %v2093, %v2091
      %v2099 = vsel %vm1137, %v1093, 0
      %v2102 = vsel %vm1137, %v1094, 0
      %2104 = vmatprep.subr.bf16.mxu0 %v2095
      %2105 = vmatpush1.bf16.msra.mxu0 %v2094
      %2106 = vmatprep.subr.bf16.mxu0 0
      %2107 = vmatpush1.bf16.msra.mxu0 0
      %2108 = vmatprep.subr.bf16.mxu0 0
      %2109 = vmatpush1.bf16.msra.mxu0 0
      %2110 = vmatprep.subr.bf16.mxu0 0
      %2111 = vmatpush1.bf16.msra.mxu0 0
      %2112 = vmatprep.subr.bf16.mxu0 0
      %2113 = vmatpush1.bf16.msra.mxu0 0
      %2114 = vmatprep.subr.bf16.mxu0 0
      %2115 = vmatpush1.bf16.msra.mxu0 0
      %2116 = vmatprep.subr.bf16.mxu0 0
      %2117 = vmatpush1.bf16.msra.mxu0 0
      %2118 = vmatprep.subr.bf16.mxu0 0
      %2119 = vmatpush1.bf16.msra.mxu0 0
      %2120 = vmatprep.subr.bf16.mxu0 0
      %2121 = vmatpush1.bf16.msra.mxu0 0
      %2122 = vmatprep.subr.bf16.mxu0 0
      %2123 = vmatpush1.bf16.msra.mxu0 0
      %2124 = vmatprep.subr.bf16.mxu0 0
      %2125 = vmatpush1.bf16.msra.mxu0 0
      %2126 = vmatprep.subr.bf16.mxu0 0
      %2127 = vmatpush1.bf16.msra.mxu0 0
      %2128 = vmatprep.subr.bf16.mxu0 0
      %2129 = vmatpush1.bf16.msra.mxu0 0
      %2130 = vmatprep.subr.bf16.mxu0 0
      %2131 = vmatpush1.bf16.msra.mxu0 0
      %2132 = vmatprep.subr.bf16.mxu0 0
      %2133 = vmatpush1.bf16.msra.mxu0 0
      %2134 = vmatprep.subr.bf16.mxu0 0
      %2135 = vmatpush1.bf16.msra.mxu0 0
      %2136 = vmatprep.mubr.bf16.mxu0 0
      %2137 = vmatmul.mubr.bf16.gmra.mrb[0].mxu0 %v2099
      %v2138 = vpop.f32.mrb[0].mxu0
      %v2139 = vadd.f32 0.0, %v2138
      %v2140 = vpop.f32.mrb[0].mxu0
      %v2141 = vpop.f32.mrb[0].mxu0
      %v2142 = vpop.f32.mrb[0].mxu0
      %v2143 = vadd.f32 0.0, %v2142
      %2144 = vmatprep.mubr.bf16.mxu0 0
      %2145 = vmatmul.mubr.bf16.gmra.mrb[0].mxu0 %v2102
      %v2146 = vpop.f32.mrb[0].mxu0
      %v2147 = vpop.f32.mrb[0].mxu0
      %v2148 = vadd.f32 0.0, %v2147
      %v2149 = vpop.f32.mrb[0].mxu0
      %v2150 = vpop.f32.mrb[0].mxu0
      %2151 = vdwg.mxu0
      %v2152 = vadd.f32 %v1179, %v1243
      %v2153 = vadd.f32 %v2152, %v1307
      %v2154 = vadd.f32 %v2153, %v1371
      %v2155 = vadd.f32 %v2154, %v1435
      %v2156 = vadd.f32 %v2155, %v1499
      %v2157 = vadd.f32 %v2156, %v1563
      %v2158 = vadd.f32 %v2157, %v1627
      %v2159 = vadd.f32 %v2158, %v1691
      %v2160 = vadd.f32 %v2159, %v1755
      %v2161 = vadd.f32 %v2160, %v1819
      %v2162 = vadd.f32 %v2161, %v1883
      %v2163 = vadd.f32 %v2162, %v1947
      %v2164 = vadd.f32 %v2163, %v2011
      %v2165 = vadd.f32 %v2164, %v2075
      %v2166 = vadd.f32 %v2165, %v2139
      %v2167 = vadd.f32 %v1183, %v1247
      %v2168 = vadd.f32 %v2167, %v1311
      %v2169 = vadd.f32 %v2168, %v1375
      %v2170 = vadd.f32 %v2169, %v1439
      %v2171 = vadd.f32 %v2170, %v1503
      %v2172 = vadd.f32 %v2171, %v1567
      %v2173 = vadd.f32 %v2172, %v1631
      %v2174 = vadd.f32 %v2173, %v1695
      %v2175 = vadd.f32 %v2174, %v1759
      %v2176 = vadd.f32 %v2175, %v1823
      %v2177 = vadd.f32 %v2176, %v1887
      %v2178 = vadd.f32 %v2177, %v1951
      %v2179 = vadd.f32 %v2178, %v2015
      %v2180 = vadd.f32 %v2179, %v2079
      %v2181 = vadd.f32 %v2180, %v2143
      %v2182 = vadd.f32 %v1188, %v1252
      %v2183 = vadd.f32 %v2182, %v1316
      %v2184 = vadd.f32 %v2183, %v1380
      %v2185 = vadd.f32 %v2184, %v1444
      %v2186 = vadd.f32 %v2185, %v1508
      %v2187 = vadd.f32 %v2186, %v1572
      %v2188 = vadd.f32 %v2187, %v1636
      %v2189 = vadd.f32 %v2188, %v1700
      %v2190 = vadd.f32 %v2189, %v1764
      %v2191 = vadd.f32 %v2190, %v1828
      %v2192 = vadd.f32 %v2191, %v1892
      %v2193 = vadd.f32 %v2192, %v1956
      %v2194 = vadd.f32 %v2193, %v2020
      %v2195 = vadd.f32 %v2194, %v2084
      %v2196 = vadd.f32 %v2195, %v2148
      %v2197 = vld [vmem:[%s7] ss:$8 sm:$0x3]
      %v2199 = vlaneseq
      %v2200 = vshrl.u32 %v2199, 7
      %v2201 = vsub.s32 0, %v2200
      %v2202 = vrot.slane %v2197, %v2201
      %v2203 = vlaneseq
      %v2204 = vshrl.u32 %v2203, 7
      %v2205 = vsub.s32 1, %v2204
      %v2206 = vrot.slane %v2197, %v2205
      %v2209 = vadd.f32 %v2166, %v2202
      %v2210 = vadd.f32 %v2181, %v2206
      %v2211 = vadd.f32 %v2196, %v2206
      %v2212 = vmax.f32 %v2209, 0.0
      %v2213 = vmax.f32 %v2210, 0.0
      %v2214 = vmax.f32 %v2211, 0.0
      %v2215 = vpack.c.bf16 %v2213, %v2212
      %v2216 = vpack.c.bf16 %v2214, %v2214
      %v2217 = vld [vmem:[%s4] sm:$0xff]
      %v2218 = vld [vmem:[%s4 + $0x8] sm:$0xff]
      %v2219 = vld [vmem:[%s4 + $0x10] sm:$0xff]
      %v2220 = vld [vmem:[%s4 + $0x18] sm:$0xff]
      %v2221 = vld [vmem:[%s4 + $0x20] sm:$0xff]
      %v2222 = vld [vmem:[%s4 + $0x28] sm:$0xff]
      %v2223 = vld [vmem:[%s4 + $0x30] sm:$0xff]
      %v2224 = vld [vmem:[%s4 + $0x38] sm:$0xff]
      %v2225 = vld [vmem:[%s4 + $0x40] sm:$0xff]
      %v2226 = vld [vmem:[%s4 + $0x48] sm:$0xff]
      %v2227 = vld [vmem:[%s4 + $0x50] sm:$0xff]
      %v2228 = vld [vmem:[%s4 + $0x58] sm:$0xff]
      %v2229 = vld [vmem:[%s4 + $0x60] sm:$0xff]
      %v2230 = vld [vmem:[%s4 + $0x68] sm:$0xff]
      %v2231 = vld [vmem:[%s4 + $0x70] sm:$0xff]
      %v2232 = vld [vmem:[%s4 + $0x78] sm:$0xff]
      %s2233 = scalar_lea.vmem %s7, 1
      %v2234 = vld [vmem:[%s2233] ss:$8 sm:$0x3]
      %v2236 = vlaneseq
      %v2237 = vshrl.u32 %v2236, 7
      %v2238 = vsub.s32 0, %v2237
      %v2239 = vrot.slane %v2234, %v2238
      %v2240 = vlaneseq
      %v2241 = vshrl.u32 %v2240, 7
      %v2242 = vsub.s32 1, %v2241
      %v2243 = vrot.slane %v2234, %v2242
      %v2262 = vunpack.c.l.b16 %v2217
      %v2263 = vunpack.c.h.b16 %v2217
      %v2264 = vunpack.c.l.b16 %v2218
      %v2265 = vunpack.c.h.b16 %v2218
      %v2266 = vunpack.c.l.b16 %v2219
      %v2267 = vunpack.c.h.b16 %v2219
      %v2268 = vunpack.c.l.b16 %v2220
      %v2269 = vunpack.c.h.b16 %v2220
      %v2270 = vunpack.c.l.b16 %v2221
      %v2271 = vunpack.c.h.b16 %v2221
      %v2272 = vunpack.c.l.b16 %v2222
      %v2273 = vunpack.c.h.b16 %v2222
      %v2274 = vunpack.c.l.b16 %v2223
      %v2275 = vunpack.c.h.b16 %v2223
      %v2276 = vunpack.c.l.b16 %v2224
      %v2277 = vunpack.c.h.b16 %v2224
      %v2278 = vunpack.c.l.b16 %v2225
      %v2279 = vunpack.c.h.b16 %v2225
      %v2280 = vunpack.c.l.b16 %v2226
      %v2281 = vunpack.c.h.b16 %v2226
      %v2282 = vunpack.c.l.b16 %v2227
      %v2283 = vunpack.c.h.b16 %v2227
      %v2284 = vunpack.c.l.b16 %v2228
      %v2285 = vunpack.c.h.b16 %v2228
      %v2286 = vunpack.c.l.b16 %v2229
      %v2287 = vunpack.c.h.b16 %v2229
      %v2288 = vunpack.c.l.b16 %v2230
      %v2289 = vunpack.c.h.b16 %v2230
      %v2290 = vunpack.c.l.b16 %v2231
      %v2291 = vunpack.c.h.b16 %v2231
      %v2292 = vunpack.c.l.b16 %v2232
      %v2293 = vunpack.c.h.b16 %v2232
      %v2294 = vpack.c.b16 %v2264, %v2262
      %v2295 = vpack.c.b16 %v2265, %v2263
      %v2296 = vpack.c.b16 %v2268, %v2266
      %v2297 = vpack.c.b16 %v2269, %v2267
      %v2298 = vpack.c.b16 %v2272, %v2270
      %v2299 = vpack.c.b16 %v2273, %v2271
      %v2300 = vpack.c.b16 %v2276, %v2274
      %v2301 = vpack.c.b16 %v2277, %v2275
      %v2302 = vpack.c.b16 %v2280, %v2278
      %v2303 = vpack.c.b16 %v2281, %v2279
      %v2304 = vpack.c.b16 %v2284, %v2282
      %v2305 = vpack.c.b16 %v2285, %v2283
      %v2306 = vpack.c.b16 %v2288, %v2286
      %v2307 = vpack.c.b16 %v2289, %v2287
      %v2308 = vpack.c.b16 %v2292, %v2290
      %v2309 = vpack.c.b16 %v2293, %v2291
      %2326 = vmatprep.subr.bf16.mxu0 %v2295
      %2327 = vmatpush1.bf16.msra.mxu0 %v2294
      %2328 = vmatprep.subr.bf16.mxu0 %v2297
      %2329 = vmatpush1.bf16.msra.mxu0 %v2296
      %2330 = vmatprep.subr.bf16.mxu0 %v2299
      %2331 = vmatpush1.bf16.msra.mxu0 %v2298
      %2332 = vmatprep.subr.bf16.mxu0 %v2301
      %2333 = vmatpush1.bf16.msra.mxu0 %v2300
      %2334 = vmatprep.subr.bf16.mxu0 %v2303
      %2335 = vmatpush1.bf16.msra.mxu0 %v2302
      %2336 = vmatprep.subr.bf16.mxu0 %v2305
      %2337 = vmatpush1.bf16.msra.mxu0 %v2304
      %2338 = vmatprep.subr.bf16.mxu0 %v2307
      %2339 = vmatpush1.bf16.msra.mxu0 %v2306
      %2340 = vmatprep.subr.bf16.mxu0 %v2309
      %2341 = vmatpush1.bf16.msra.mxu0 %v2308
      %2342 = vmatprep.subr.bf16.mxu0 0
      %2343 = vmatpush1.bf16.msra.mxu0 0
      %2344 = vmatprep.subr.bf16.mxu0 0
      %2345 = vmatpush1.bf16.msra.mxu0 0
      %2346 = vmatprep.subr.bf16.mxu0 0
      %2347 = vmatpush1.bf16.msra.mxu0 0
      %2348 = vmatprep.subr.bf16.mxu0 0
      %2349 = vmatpush1.bf16.msra.mxu0 0
      %2350 = vmatprep.subr.bf16.mxu0 0
      %2351 = vmatpush1.bf16.msra.mxu0 0
      %2352 = vmatprep.subr.bf16.mxu0 0
      %2353 = vmatpush1.bf16.msra.mxu0 0
      %2354 = vmatprep.subr.bf16.mxu0 0
      %2355 = vmatpush1.bf16.msra.mxu0 0
      %2356 = vmatprep.subr.bf16.mxu0 0
      %2357 = vmatpush1.bf16.msra.mxu0 0
      %2358 = vmatprep.mubr.bf16.mxu0 0
      %2359 = vmatmul.mubr.bf16.gmra.mrb[0].mxu0 %v2215
      %v2360 = vpop.f32.mrb[0].mxu0
      %v2361 = vadd.f32 %v2239, %v2360
      %v2362 = vpop.f32.mrb[0].mxu0
      %v2363 = vpop.f32.mrb[0].mxu0
      %v2364 = vpop.f32.mrb[0].mxu0
      %v2365 = vadd.f32 %v2243, %v2364
      %2366 = vmatprep.mubr.bf16.mxu0 0
      %2367 = vmatmul.mubr.bf16.gmra.mrb[0].mxu0 %v2216
      %v2368 = vpop.f32.mrb[0].mxu0
      %v2369 = vpop.f32.mrb[0].mxu0
      %v2370 = vadd.f32 %v2243, %v2369
      %v2371 = vpop.f32.mrb[0].mxu0
      %v2372 = vpop.f32.mrb[0].mxu0
      %2373 = vdwg.mxu0
      %v2374 = vmax.f32 %v2361, 0.0
      %v2375 = vmax.f32 %v2365, 0.0
      %v2376 = vmax.f32 %v2370, 0.0
      %2377 = vst [vmem:[%s411] sm:$0xff] %v2374
      %v2378 = vpack.c.bf16 %v2374, %v2374
      %v2379 = vld [vmem:[%s5] sm:$0xff]
      %v2380 = vld [vmem:[%s5 + $0x8] sm:$0xff]
      %v2381 = vld [vmem:[%s5 + $0x10] sm:$0xff]
      %v2382 = vld [vmem:[%s5 + $0x18] sm:$0xff]
      %v2383 = vld [vmem:[%s5 + $0x20] sm:$0xff]
      %v2384 = vld [vmem:[%s5 + $0x28] sm:$0xff]
      %v2385 = vld [vmem:[%s5 + $0x30] sm:$0xff]
      %v2386 = vld [vmem:[%s5 + $0x38] sm:$0xff]
      %v2387 = vld [vmem:[%s5 + $0x40] sm:$0xff]
      %v2388 = vld [vmem:[%s5 + $0x48] sm:$0xff]
      %v2389 = vld [vmem:[%s5 + $0x50] sm:$0xff]
      %v2390 = vld [vmem:[%s5 + $0x58] sm:$0xff]
      %v2391 = vld [vmem:[%s5 + $0x60] sm:$0xff]
      %v2392 = vld [vmem:[%s5 + $0x68] sm:$0xff]
      %v2393 = vld [vmem:[%s5 + $0x70] sm:$0xff]
      %v2394 = vld [vmem:[%s5 + $0x78] sm:$0xff]
      %v2411 = vunpack.c.l.b16 %v2379
      %v2412 = vunpack.c.h.b16 %v2379
      %v2413 = vunpack.c.l.b16 %v2380
      %v2414 = vunpack.c.h.b16 %v2380
      %v2415 = vunpack.c.l.b16 %v2381
      %v2416 = vunpack.c.h.b16 %v2381
      %v2417 = vunpack.c.l.b16 %v2382
      %v2418 = vunpack.c.h.b16 %v2382
      %v2419 = vunpack.c.l.b16 %v2383
      %v2420 = vunpack.c.h.b16 %v2383
      %v2421 = vunpack.c.l.b16 %v2384
      %v2422 = vunpack.c.h.b16 %v2384
      %v2423 = vunpack.c.l.b16 %v2385
      %v2424 = vunpack.c.h.b16 %v2385
      %v2425 = vunpack.c.l.b16 %v2386
      %v2426 = vunpack.c.h.b16 %v2386
      %v2427 = vunpack.c.l.b16 %v2387
      %v2428 = vunpack.c.h.b16 %v2387
      %v2429 = vunpack.c.l.b16 %v2388
      %v2430 = vunpack.c.h.b16 %v2388
      %v2431 = vunpack.c.l.b16 %v2389
      %v2432 = vunpack.c.h.b16 %v2389
      %v2433 = vunpack.c.l.b16 %v2390
      %v2434 = vunpack.c.h.b16 %v2390
      %v2435 = vunpack.c.l.b16 %v2391
      %v2436 = vunpack.c.h.b16 %v2391
      %v2437 = vunpack.c.l.b16 %v2392
      %v2438 = vunpack.c.h.b16 %v2392
      %v2439 = vunpack.c.l.b16 %v2393
      %v2440 = vunpack.c.h.b16 %v2393
      %v2441 = vunpack.c.l.b16 %v2394
      %v2442 = vunpack.c.h.b16 %v2394
      %v2443 = vpack.c.b16 %v2413, %v2411
      %v2444 = vpack.c.b16 %v2414, %v2412
      %v2445 = vpack.c.b16 %v2417, %v2415
      %v2446 = vpack.c.b16 %v2418, %v2416
      %v2447 = vpack.c.b16 %v2421, %v2419
      %v2448 = vpack.c.b16 %v2422, %v2420
      %v2449 = vpack.c.b16 %v2425, %v2423
      %v2450 = vpack.c.b16 %v2426, %v2424
      %v2451 = vpack.c.b16 %v2429, %v2427
      %v2452 = vpack.c.b16 %v2430, %v2428
      %v2453 = vpack.c.b16 %v2433, %v2431
      %v2454 = vpack.c.b16 %v2434, %v2432
      %v2455 = vpack.c.b16 %v2437, %v2435
      %v2456 = vpack.c.b16 %v2438, %v2436
      %v2457 = vpack.c.b16 %v2441, %v2439
      %v2458 = vpack.c.b16 %v2442, %v2440
      %2475 = vmatprep.subr.bf16.mxu0 %v2444
      %2476 = vmatpush1.bf16.msra.mxu0 %v2443
      %2477 = vmatprep.subr.bf16.mxu0 %v2446
      %2478 = vmatpush1.bf16.msra.mxu0 %v2445
      %2479 = vmatprep.subr.bf16.mxu0 %v2448
      %2480 = vmatpush1.bf16.msra.mxu0 %v2447
      %2481 = vmatprep.subr.bf16.mxu0 %v2450
      %2482 = vmatpush1.bf16.msra.mxu0 %v2449
      %2483 = vmatprep.subr.bf16.mxu0 %v2452
      %2484 = vmatpush1.bf16.msra.mxu0 %v2451
      %2485 = vmatprep.subr.bf16.mxu0 %v2454
      %2486 = vmatpush1.bf16.msra.mxu0 %v2453
      %2487 = vmatprep.subr.bf16.mxu0 %v2456
      %2488 = vmatpush1.bf16.msra.mxu0 %v2455
      %2489 = vmatprep.subr.bf16.mxu0 %v2458
      %2490 = vmatpush1.bf16.msra.mxu0 %v2457
      %2491 = vmatprep.subr.bf16.mxu0 0
      %2492 = vmatpush1.bf16.msra.mxu0 0
      %2493 = vmatprep.subr.bf16.mxu0 0
      %2494 = vmatpush1.bf16.msra.mxu0 0
      %2495 = vmatprep.subr.bf16.mxu0 0
      %2496 = vmatpush1.bf16.msra.mxu0 0
      %2497 = vmatprep.subr.bf16.mxu0 0
      %2498 = vmatpush1.bf16.msra.mxu0 0
      %2499 = vmatprep.subr.bf16.mxu0 0
      %2500 = vmatpush1.bf16.msra.mxu0 0
      %2501 = vmatprep.subr.bf16.mxu0 0
      %2502 = vmatpush1.bf16.msra.mxu0 0
      %2503 = vmatprep.subr.bf16.mxu0 0
      %2504 = vmatpush1.bf16.msra.mxu0 0
      %2505 = vmatprep.subr.bf16.mxu0 0
      %2506 = vmatpush1.bf16.msra.mxu0 0
      %2507 = vmatprep.mubr.bf16.mxu0 0
      %2508 = vmatmul.mubr.bf16.gmra.mrb[0].mxu0 %v2378
      %v2509 = vpop.f32.mrb[0].mxu0
      %v2510 = vadd.f32 0.0, %v2509
      %v2511 = vpop.f32.mrb[0].mxu0
      %v2512 = vadd.f32 0.0, %v2511
      %v2513 = vpop.f32.mrb[0].mxu0
      %v2514 = vpop.f32.mrb[0].mxu0
      %2515 = vdwg.mxu0
      %v2516 = vpack.c.bf16 %v2512, %v2510
      %v2517 = vld [vmem:[%s407] sm:$0xf]
      %v2518 = vld [vmem:[%s407 + $0x4] sm:$0xf]
      %v2519 = vld [vmem:[%s7 + $0x3] ss:$0 sm:$0xff]
      %v2522 = vunpack.c.l.b16 %v2517
      %v2523 = vunpack.c.l.b16 %v2518
      %v2524 = vpack.c.b16 %v2523, %v2522
      %v2526 = vsel %vm1137, %v2524, 0
      %2528 = vmatprep.subr.bf16.mxu0 0
      %2529 = vmatpush1.bf16.msra.mxu0 %v2516
      %2530 = vmatprep.subr.bf16.mxu0 0
      %2531 = vmatpush1.bf16.msra.mxu0 0
      %2532 = vmatprep.subr.bf16.mxu0 0
      %2533 = vmatpush1.bf16.msra.mxu0 0
      %2534 = vmatprep.subr.bf16.mxu0 0
      %2535 = vmatpush1.bf16.msra.mxu0 0
      %2536 = vmatprep.subr.bf16.mxu0 0
      %2537 = vmatpush1.bf16.msra.mxu0 0
      %2538 = vmatprep.subr.bf16.mxu0 0
      %2539 = vmatpush1.bf16.msra.mxu0 0
      %2540 = vmatprep.subr.bf16.mxu0 0
      %2541 = vmatpush1.bf16.msra.mxu0 0
      %2542 = vmatprep.subr.bf16.mxu0 0
      %2543 = vmatpush1.bf16.msra.mxu0 0
      %2544 = vmatprep.subr.bf16.mxu0 0
      %2545 = vmatpush1.bf16.msra.mxu0 0
      %2546 = vmatprep.subr.bf16.mxu0 0
      %2547 = vmatpush1.bf16.msra.mxu0 0
      %2548 = vmatprep.subr.bf16.mxu0 0
      %2549 = vmatpush1.bf16.msra.mxu0 0
      %2550 = vmatprep.subr.bf16.mxu0 0
      %2551 = vmatpush1.bf16.msra.mxu0 0
      %2552 = vmatprep.subr.bf16.mxu0 0
      %2553 = vmatpush1.bf16.msra.mxu0 0
      %2554 = vmatprep.subr.bf16.mxu0 0
      %2555 = vmatpush1.bf16.msra.mxu0 0
      %2556 = vmatprep.subr.bf16.mxu0 0
      %2557 = vmatpush1.bf16.msra.mxu0 0
      %2558 = vmatprep.subr.bf16.mxu0 0
      %2559 = vmatpush1.bf16.msra.mxu0 0
      %2560 = vmatprep.mubr.bf16.mxu0 0
      %2561 = vmatmul.mubr.bf16.gmra.mrb[0].mxu0 %v2526
      %v2562 = vpop.f32.mrb[0].mxu0
      %v2563 = vadd.f32 %v2519, %v2562
      %v2564 = vpop.f32.mrb[0].mxu0
      %v2565 = vpop.f32.mrb[0].mxu0
      %v2566 = vadd.f32 %v2519, %v2565
      %v2567 = vpop.f32.mrb[0].mxu0
      %2568 = vdwg.mxu0
      %v2569 = vmax.f32 %v2563, 0.0
      %v2570 = vmax.f32 %v2566, 0.0
      %v2571 = vmul.f32 %v2569, %v2375
      %v2572 = vmul.f32 %v2570, %v2376
      %v2573 = vpack.c.bf16 %v2571, %v2374
      %v2574 = vpack.c.bf16 %v2572, %v2572
      %v2575 = vld [vmem:[%s6] sm:$0xff]
      %v2576 = vld [vmem:[%s6 + $0x8] sm:$0xff]
      %v2577 = vld [vmem:[%s6 + $0x10] sm:$0xff]
      %v2578 = vld [vmem:[%s6 + $0x18] sm:$0xff]
      %v2579 = vld [vmem:[%s6 + $0x20] sm:$0xff]
      %v2580 = vld [vmem:[%s6 + $0x28] sm:$0xff]
      %v2581 = vld [vmem:[%s6 + $0x30] sm:$0xff]
      %v2582 = vld [vmem:[%s6 + $0x38] sm:$0xff]
      %v2583 = vld [vmem:[%s6 + $0x40] sm:$0xff]
      %v2584 = vld [vmem:[%s6 + $0x48] sm:$0xff]
      %v2585 = vld [vmem:[%s6 + $0x50] sm:$0xff]
      %v2586 = vld [vmem:[%s6 + $0x58] sm:$0xff]
      %v2587 = vld [vmem:[%s6 + $0x60] sm:$0xff]
      %v2588 = vld [vmem:[%s6 + $0x68] sm:$0xff]
      %v2589 = vld [vmem:[%s6 + $0x70] sm:$0xff]
      %v2590 = vld [vmem:[%s6 + $0x78] sm:$0xff]
      %s2591 = scalar_lea.vmem %s7, 2
      %v2592 = vld [vmem:[%s2591] ss:$8 sm:$0x3]
      %v2594 = vlaneseq
      %v2595 = vshrl.u32 %v2594, 7
      %v2596 = vsub.s32 0, %v2595
      %v2597 = vrot.slane %v2592, %v2596
      %v2598 = vlaneseq
      %v2599 = vshrl.u32 %v2598, 7
      %v2600 = vsub.s32 1, %v2599
      %v2601 = vrot.slane %v2592, %v2600
      %v2620 = vunpack.c.l.b16 %v2575
      %v2621 = vunpack.c.h.b16 %v2575
      %v2622 = vunpack.c.l.b16 %v2576
      %v2623 = vunpack.c.h.b16 %v2576
      %v2624 = vunpack.c.l.b16 %v2577
      %v2625 = vunpack.c.h.b16 %v2577
      %v2626 = vunpack.c.l.b16 %v2578
      %v2627 = vunpack.c.h.b16 %v2578
      %v2628 = vunpack.c.l.b16 %v2579
      %v2629 = vunpack.c.h.b16 %v2579
      %v2630 = vunpack.c.l.b16 %v2580
      %v2631 = vunpack.c.h.b16 %v2580
      %v2632 = vunpack.c.l.b16 %v2581
      %v2633 = vunpack.c.h.b16 %v2581
      %v2634 = vunpack.c.l.b16 %v2582
      %v2635 = vunpack.c.h.b16 %v2582
      %v2636 = vunpack.c.l.b16 %v2583
      %v2637 = vunpack.c.h.b16 %v2583
      %v2638 = vunpack.c.l.b16 %v2584
      %v2639 = vunpack.c.h.b16 %v2584
      %v2640 = vunpack.c.l.b16 %v2585
      %v2641 = vunpack.c.h.b16 %v2585
      %v2642 = vunpack.c.l.b16 %v2586
      %v2643 = vunpack.c.h.b16 %v2586
      %v2644 = vunpack.c.l.b16 %v2587
      %v2645 = vunpack.c.h.b16 %v2587
      %v2646 = vunpack.c.l.b16 %v2588
      %v2647 = vunpack.c.h.b16 %v2588
      %v2648 = vunpack.c.l.b16 %v2589
      %v2649 = vunpack.c.h.b16 %v2589
      %v2650 = vunpack.c.l.b16 %v2590
      %v2651 = vunpack.c.h.b16 %v2590
      %v2652 = vpack.c.b16 %v2622, %v2620
      %v2653 = vpack.c.b16 %v2623, %v2621
      %v2654 = vpack.c.b16 %v2626, %v2624
      %v2655 = vpack.c.b16 %v2627, %v2625
      %v2656 = vpack.c.b16 %v2630, %v2628
      %v2657 = vpack.c.b16 %v2631, %v2629
      %v2658 = vpack.c.b16 %v2634, %v2632
      %v2659 = vpack.c.b16 %v2635, %v2633
      %v2660 = vpack.c.b16 %v2638, %v2636
      %v2661 = vpack.c.b16 %v2639, %v2637
      %v2662 = vpack.c.b16 %v2642, %v2640
      %v2663 = vpack.c.b16 %v2643, %v2641
      %v2664 = vpack.c.b16 %v2646, %v2644
      %v2665 = vpack.c.b16 %v2647, %v2645
      %v2666 = vpack.c.b16 %v2650, %v2648
      %v2667 = vpack.c.b16 %v2651, %v2649
      %2684 = vmatprep.subr.bf16.mxu0 %v2653
      %2685 = vmatpush1.bf16.msra.mxu0 %v2652
      %2686 = vmatprep.subr.bf16.mxu0 %v2655
      %2687 = vmatpush1.bf16.msra.mxu0 %v2654
      %2688 = vmatprep.subr.bf16.mxu0 %v2657
      %2689 = vmatpush1.bf16.msra.mxu0 %v2656
      %2690 = vmatprep.subr.bf16.mxu0 %v2659
      %2691 = vmatpush1.bf16.msra.mxu0 %v2658
      %2692 = vmatprep.subr.bf16.mxu0 %v2661
      %2693 = vmatpush1.bf16.msra.mxu0 %v2660
      %2694 = vmatprep.subr.bf16.mxu0 %v2663
      %2695 = vmatpush1.bf16.msra.mxu0 %v2662
      %2696 = vmatprep.subr.bf16.mxu0 %v2665
      %2697 = vmatpush1.bf16.msra.mxu0 %v2664
      %2698 = vmatprep.subr.bf16.mxu0 %v2667
      %2699 = vmatpush1.bf16.msra.mxu0 %v2666
      %2700 = vmatprep.subr.bf16.mxu0 0
      %2701 = vmatpush1.bf16.msra.mxu0 0
      %2702 = vmatprep.subr.bf16.mxu0 0
      %2703 = vmatpush1.bf16.msra.mxu0 0
      %2704 = vmatprep.subr.bf16.mxu0 0
      %2705 = vmatpush1.bf16.msra.mxu0 0
      %2706 = vmatprep.subr.bf16.mxu0 0
      %2707 = vmatpush1.bf16.msra.mxu0 0
      %2708 = vmatprep.subr.bf16.mxu0 0
      %2709 = vmatpush1.bf16.msra.mxu0 0
      %2710 = vmatprep.subr.bf16.mxu0 0
      %2711 = vmatpush1.bf16.msra.mxu0 0
      %2712 = vmatprep.subr.bf16.mxu0 0
      %2713 = vmatpush1.bf16.msra.mxu0 0
      %2714 = vmatprep.subr.bf16.mxu0 0
      %2715 = vmatpush1.bf16.msra.mxu0 0
      %2716 = vmatprep.mubr.bf16.mxu0 0
      %2717 = vmatmul.mubr.bf16.gmra.mrb[0].mxu0 %v2573
      %v2718 = vpop.f32.mrb[0].mxu0
      %v2719 = vadd.f32 %v2597, %v2718
      %v2720 = vpop.f32.mrb[0].mxu0
      %v2721 = vpop.f32.mrb[0].mxu0
      %v2722 = vpop.f32.mrb[0].mxu0
      %v2723 = vadd.f32 %v2601, %v2722
      %2724 = vmatprep.mubr.bf16.mxu0 0
      %2725 = vmatmul.mubr.bf16.gmra.mrb[0].mxu0 %v2574
      %v2726 = vpop.f32.mrb[0].mxu0
      %v2727 = vpop.f32.mrb[0].mxu0
      %v2728 = vadd.f32 %v2601, %v2727
      %v2729 = vpop.f32.mrb[0].mxu0
      %v2730 = vpop.f32.mrb[0].mxu0
      %2731 = vdwg.mxu0
      %2732 = vmax.xlane.f32.xlu0 %v2719
      %v2733 = vpop.xlane.xlu0 %2732
      %v2734 = vsub.f32 %v2719, %v2733
      %v2735 = vmul.f32 %v2734, 1.442695
      %v2736 = vpow.pop %v2735
      %2737 = vadd.xlane.f32.xlu0 %v2736
      %v2738 = vpop.xlane.xlu0 %2737
      %v2739 = vrcp.pop %v2738
      %v2740 = vmul.f32 %v2736, %v2739
      %2741 = vst [vmem:[%s415] sm:$0xff] %v2740
      %2742 = vmax.xlane.f32.xlu0 %v2723
      %v2743 = vpop.xlane.xlu0 %2742
      %2744 = vmax.xlane.f32.xlu0 %v2728
      %v2745 = vpop.xlane.xlu0 %2744
      %v2746 = vsub.f32 %v2723, %v2743
      %v2747 = vsub.f32 %v2728, %v2745
      %v2748 = vmul.f32 %v2746, 1.442695
      %v2749 = vpow.pop %v2748
      %v2750 = vmul.f32 %v2747, 1.442695
      %v2751 = vpow.pop %v2750
      %2752 = vadd.xlane.f32.xlu0 %v2749
      %v2753 = vpop.xlane.xlu0 %2752
      %2754 = vadd.xlane.f32.xlu0 %v2751
      %v2755 = vpop.xlane.xlu0 %2754
      %v2756 = vrcp.pop %v2753
      %v2757 = vmul.f32 %v2749, %v2756
      %v2758 = vrcp.pop %v2755
      %v2759 = vmul.f32 %v2751, %v2758
      %2760 = vst [vmem:[%s420] sm:$0xff] %v2757
      %2761 = vst [vmem:[%s420 + $0x8] sm:$0xff] %v2759
      %p2762 = scmp.lt.s32.totalorder %s22, 1
      %s2763 = scalar_select %p2762, %s22, 1
      %s2764 = smul.addr %s2763, 8
      %s2765 = scalar_lea.vmem %s8, %s2764
      %p2766 = scmp.lt.s32.totalorder %s22, 1
      %s2767 = scalar_select %p2766, %s22, 1
      %s2768 = smul.addr %s2767, 8
      %s2769 = scalar_lea.vmem %s9, %s2768
      %p2770 = scmp.lt.s32.totalorder %s22, 1
      %s2771 = scalar_select %p2770, %s22, 1
      %s2772 = smul.addr %s2771, 2
      %s2773 = smul.addr %s2772, 8
      %s2774 = scalar_lea.vmem %s10, %s2773
      // Predicated region
      $region53: #{roi_relation_head_forward.1} parent=51 // pred_check
        %p2775 = pneg %p223
      $region54: #{roi_relation_head_forward.1} parent=51 // pred_check_branch
        %2777 = sbr.rel (%p2775) target = $region56
      $region55: #{roi_relation_head_forward.1} parent=51 // pred_region
        _
      $region56: #{roi_relation_head_forward.1} parent=51 // pred_fallthru
        _
      // Predicated region
      $region57: #{roi_relation_head_forward.1} parent=51 // pred_check
        %p2778 = pneg %p249
      $region58: #{roi_relation_head_forward.1} parent=51 // pred_check_branch
        %2780 = sbr.rel (%p2778) target = $region60
      $region59: #{roi_relation_head_forward.1} parent=51 // pred_region
        _
      $region60: #{roi_relation_head_forward.1} parent=51 // pred_fallthru
        _
      // Predicated region
      $region61: #{roi_relation_head_forward.1} parent=51 // pred_check
        %p2781 = pneg %p275
      $region62: #{roi_relation_head_forward.1} parent=51 // pred_check_branch
        %2783 = sbr.rel (%p2781) target = $region64
      $region63: #{roi_relation_head_forward.1} parent=51 // pred_region
        _
      $region64: #{roi_relation_head_forward.1} parent=51 // pred_fallthru
        _
    $region52: #{roi_relation_head_forward.1} parent=5 // pred_fallthru
      _
    %p2784 = scmp.le.s32.totalorder 2, %s17
    // Predicated region
    $region65: #{roi_relation_head_forward.1} parent=5 // pred_check
      %p2785 = pneg %p2784
    $region66: #{roi_relation_head_forward.1} parent=5 // pred_check_branch
      %2787 = sbr.rel (%p2785) target = $region68
    $region67: #{roi_relation_head_forward.1} parent=5 // pred_region
      %s2788 = ssub.s32 %s17, 2
      // Predicated region
      $region69: #{roi_relation_head_forward.1} parent=67 // pred_check
        %p2789 = pneg %p229
      $region70: #{roi_relation_head_forward.1} parent=67 // pred_check_branch
        %2791 = sbr.rel (%p2789) target = $region72
      $region71: #{roi_relation_head_forward.1} parent=67 // pred_region
        %p2792 = scmp.lt.s32.totalorder %s23, 1
        %s2793 = scalar_select %p2792, %s23, 1
        %s2794 = smul.addr %s2793, 8
        %s2795 = scalar_lea.vmem %s8, %s2794
      $region72: #{roi_relation_head_forward.1} parent=67 // pred_fallthru
        _
      // Predicated region
      $region73: #{roi_relation_head_forward.1} parent=67 // pred_check
        %p2796 = pneg %p255
      $region74: #{roi_relation_head_forward.1} parent=67 // pred_check_branch
        %2798 = sbr.rel (%p2796) target = $region76
      $region75: #{roi_relation_head_forward.1} parent=67 // pred_region
        %p2799 = scmp.lt.s32.totalorder %s23, 1
        %s2800 = scalar_select %p2799, %s23, 1
        %s2801 = smul.addr %s2800, 8
        %s2802 = scalar_lea.vmem %s9, %s2801
      $region76: #{roi_relation_head_forward.1} parent=67 // pred_fallthru
        _
      // Predicated region
      $region77: #{roi_relation_head_forward.1} parent=67 // pred_check
        %p2803 = pneg %p281
      $region78: #{roi_relation_head_forward.1} parent=67 // pred_check_branch
        %2805 = sbr.rel (%p2803) target = $region80
      $region79: #{roi_relation_head_forward.1} parent=67 // pred_region
        %p2806 = scmp.lt.s32.totalorder %s23, 1
        %s2807 = scalar_select %p2806, %s23, 1
        %s2808 = smul.addr %s2807, 2
        %s2809 = smul.addr %s2808, 8
        %s2810 = scalar_lea.vmem %s10, %s2809
      $region80: #{roi_relation_head_forward.1} parent=67 // pred_fallthru
        _
    $region68: #{roi_relation_head_forward.1} parent=5 // pred_fallthru
      _
  $region6: #{roi_relation_head_forward.1} parent=0 // loop_footer
    %s21 = sadd.s32 1, %s17
  $region7: #{roi_relation_head_forward.1} parent=0 // loop_footer_branch
    %16 = sbr.rel target = $region3
  $region8: #{roi_relation_head_forward.1} parent=0 // loop_exit
    _

</llo_original>
